<compile_context>
chip_gen: v7x
topology: tpu7x:2x2x1
jax: 0.10.0
libtpu: 0.0.40
codegen_flags: <defaults>
</compile_context>

<pallas_src>
import functools

import jax
import jax.numpy as jnp
from jax.experimental import pallas as pl
from jax.experimental.pallas import tpu as pltpu

# bitsandbytes NF4 codebook (16 levels).
_NF4_VALUES = (
    -1.0, -0.6961928009986877, -0.5250730514526367, -0.39491748809814453,
    -0.28444138169288635, -0.18477343022823334, -0.09105003625154495, 0.0,
    0.07958029955625534, 0.16093020141124725, 0.24611230194568634,
    0.33791524171829224, 0.44070982933044434, 0.5626170039176941,
    0.7229568362236023, 1.0,
)
_NF4_CODEBOOK = jnp.array(_NF4_VALUES, dtype=jnp.float32)
_NF4_BLOCKSIZE = 64


def _round_up(x: int, n: int) -> int:
  return ((x + n - 1) // n) * n


# --------------------------------------------------------------------------
# NF4 parameter prep (setup in plain JAX/XLA — not the hot path).
# --------------------------------------------------------------------------
def nf4_quantize(w):
  """Blockwise NF4 quantization along the last (`in_features`) dim.

  w: [out, in] float, in % 64 == 0.
  Returns (codes uint8 [out, in] in [0, 16), absmax float32 [out, in // 64]).
  """
  out_d, in_d = w.shape
  assert in_d % _NF4_BLOCKSIZE == 0, "in_features must be a multiple of 64"
  blocks = w.reshape(out_d, in_d // _NF4_BLOCKSIZE,
                     _NF4_BLOCKSIZE).astype(jnp.float32)
  absmax = jnp.max(jnp.abs(blocks), axis=-1)
  absmax = jnp.where(absmax == 0.0, 1.0, absmax)
  normalized = blocks / absmax[..., None]
  dist = jnp.abs(normalized[..., None] - _NF4_CODEBOOK[None, None, None, :])
  codes = jnp.argmin(dist, axis=-1).astype(jnp.uint8)
  return codes.reshape(out_d, in_d), absmax


def nf4_dequantize(codes, absmax):
  """Exact NF4 dequantization (fp32), inverse layout of nf4_quantize."""
  out_d, in_d = codes.shape
  vals = _NF4_CODEBOOK[codes.astype(jnp.int32)]
  vals = vals.reshape(out_d, in_d // _NF4_BLOCKSIZE,
                      _NF4_BLOCKSIZE) * absmax[..., None]
  return vals.reshape(out_d, in_d)


def pack_nf4_gate_up(codes_g, absmax_g, codes_u, absmax_u):
  """Kernel layout for the gate/up weights (in-kernel dequant path).

  codes_*: [m_pad, hd] uint8, absmax_*: [m_pad, hd//64] f32 (torch [out, in]).
  Returns:
    codes  [2, hd//2, m_pad] uint8 — two NF4 codes per byte; low nibble = row k
           of W^T, high nibble = row k + hd//2 (split-half packing: no lane /
           sublane interleave needed when unpacking, just a concat).
    scales [2, hd//64, m_pad] f32.
  """
  def pack_one(codes, absmax):
    ct = codes.T                                   # [hd, m_pad]
    hd_ = ct.shape[0]
    if hd_ % 256:
      raise ValueError("in-kernel NF4 path requires hidden dim % 256 == 0")
    half = hd_ // 2
    packed = ct[:half] | (ct[half:] << 4)
    return packed, absmax.T.astype(jnp.float32)

  pg, sg = pack_one(codes_g, absmax_g)
  pu, su = pack_one(codes_u, absmax_u)
  return jnp.stack([pg, pu]), jnp.stack([sg, su])


def pack_nf4_down(codes_d, absmax_d):
  """Kernel layout for the down weight (in-kernel dequant path).

  codes_d: [hd, m_pad] uint8, absmax_d: [hd, m_pad//64] f32 (torch [out, in]).
  Returns:
    codes  [m_pad, hd//2] uint8 — low nibble = col c of W^T, high = col c+hd//2.
    scales [m_pad//64, hd] f32.
  """
  ct = codes_d.T                                   # [m_pad, hd]
  hd_ = ct.shape[1]
  if hd_ % 256:
    raise ValueError("in-kernel NF4 path requires hidden dim % 256 == 0")
  half = hd_ // 2
  packed = ct[:, :half] | (ct[:, half:] << 4)
  return packed, absmax_d.T.astype(jnp.float32)


# --------------------------------------------------------------------------
# Kernels.
# --------------------------------------------------------------------------
def _nf4_lut(idx):
  """Exact 16-entry NF4 codebook lookup via a 15-select binary tree (VPU)."""
  cb = _NF4_VALUES
  b0 = (idx & 1) != 0
  b1 = (idx & 2) != 0
  b2 = (idx & 4) != 0
  b3 = (idx & 8) != 0
  l0 = [jnp.where(b0, cb[2 * i + 1], cb[2 * i]) for i in range(8)]
  l1 = [jnp.where(b1, l0[2 * i + 1], l0[2 * i]) for i in range(4)]
  l2 = [jnp.where(b2, l1[2 * i + 1], l1[2 * i]) for i in range(2)]
  return jnp.where(b3, l2[1], l2[0])


def _expand_scales(scales):
  """Broadcast per-64-block absmax along the block (second-to-last) axis."""
  *lead, nb, n = scales.shape
  s = jnp.broadcast_to(scales[..., :, None, :],
                       (*lead, nb, _NF4_BLOCKSIZE, n))
  return s.reshape(*lead, nb * _NF4_BLOCKSIZE, n)


def _mlp_kernel_bf16(x_ref, wgu_ref, wd_ref, o_ref, acc_ref):
  """One (token tile i, m tile j) step, pre-dequantized bf16 weights."""
  j = pl.program_id(1)

  @pl.when(j == 0)
  def _():
    acc_ref[...] = jnp.zeros_like(acc_ref)

  x = x_ref[...]
  # Gate + up share one streamed weight slab (stacked leading dim).
  g = jnp.dot(x, wgu_ref[0], preferred_element_type=jnp.float32)
  u = jnp.dot(x, wgu_ref[1], preferred_element_type=jnp.float32)
  h = ((g * jax.nn.sigmoid(g)) * u).astype(x.dtype)      # SiLU in f32 (EUP/VPU)
  acc_ref[...] += jnp.dot(h, wd_ref[...], preferred_element_type=jnp.float32)

  @pl.when(j == pl.num_programs(1) - 1)
  def _():
    o_ref[...] = acc_ref[...].astype(o_ref.dtype)


def _mlp_kernel_nf4(x_ref, gu_c_ref, gu_s_ref, d_c_ref, d_s_ref, o_ref,
                    acc_ref):
  """Same step, but weights arrive as packed NF4 codes + per-block absmax."""
  j = pl.program_id(1)

  @pl.when(j == 0)
  def _():
    acc_ref[...] = jnp.zeros_like(acc_ref)

  x = x_ref[...]
  cdt = x.dtype

  # ---- gate/up: unpack nibbles, codebook LUT, group scale, cast ----------
  c = gu_c_ref[...].astype(jnp.int32)                         # [2, hd/2, tn]
  vals = jnp.concatenate([_nf4_lut(c & 0xF), _nf4_lut(c >> 4)],
                         axis=1)                              # [2, hd, tn]
  wgu = (vals * _expand_scales(gu_s_ref[...])).astype(cdt)
  g = jnp.dot(x, wgu[0], preferred_element_type=jnp.float32)
  u = jnp.dot(x, wgu[1], preferred_element_type=jnp.float32)
  h = ((g * jax.nn.sigmoid(g)) * u).astype(cdt)

  # ---- down projection ----------------------------------------------------
  dc = d_c_ref[...].astype(jnp.int32)                         # [tn, hd/2]
  dvals = jnp.concatenate([_nf4_lut(dc & 0xF), _nf4_lut(dc >> 4)],
                          axis=1)                             # [tn, hd]
  wd = (dvals * _expand_scales(d_s_ref[...])).astype(cdt)
  acc_ref[...] += jnp.dot(h, wd, preferred_element_type=jnp.float32)

  @pl.when(j == pl.num_programs(1) - 1)
  def _():
    o_ref[...] = acc_ref[...].astype(o_ref.dtype)


# --------------------------------------------------------------------------
# Generation-aware tile / VMEM selection.
# --------------------------------------------------------------------------
def select_config(T, hd, m, *, nf4_in_kernel=False, compute_dtype=jnp.bfloat16):
  """Pick (tm, tn, vmem_limit_bytes) for the current TPU generation.

  Per-step arithmetic intensity of the weight-streaming loop is ~tm flops/byte,
  so v6e (ridge ~650) wants a much larger token tile than v5e (~240), while
  v7x (64 MiB VMEM/TC) wants a smaller tn and must keep VMEM headroom.
  """
  kind = ""
  try:
    kind = jax.devices()[0].device_kind.lower()
  except Exception:
    pass
  if "v6" in kind or "trillium" in kind:
    tm_pref, tn_pref, vmem_mb = 1024, 512, 100
  elif "v5 lite" in kind or "v5lite" in kind or "v5e" in kind:
    tm_pref, tn_pref, vmem_mb = 256, 512, 64
  elif "v7" in kind or "tpu7" in kind:
    tm_pref, tn_pref, vmem_mb = 512, 256, 52
  else:  # unknown generation: conservative, known-good defaults
    tm_pref, tn_pref, vmem_mb = 256, 512, 64
  try:
    phys = pltpu.get_tpu_info().vmem_capacity_bytes
    vmem_mb = min(vmem_mb, max(32, int(phys * 0.85) // (1 << 20)))
  except Exception:
    pass

  if nf4_in_kernel:
    # down-proj scale tile needs (tn // 64) % 8 == 0  ->  tn % 512 == 0.
    tn_pref = max(512, (tn_pref // 512) * 512)
    align = 512
  else:
    align = 128
  tn = min(tn_pref, _round_up(m, align))
  tm = min(tm_pref, _round_up(T, 16))

  esz = jnp.dtype(compute_dtype).itemsize

  def working_set(tm_):
    act = 4 * tm_ * hd * esz + tm_ * hd * 4          # x + out (dbuf) + f32 acc
    if nf4_in_kernel:
      w_step = (2 * (hd // 2) * tn + 2 * (hd // _NF4_BLOCKSIZE) * tn * 4
                + tn * (hd // 2) + (tn // _NF4_BLOCKSIZE) * hd * 4)
      w = 2 * w_step + 3 * hd * tn * 10              # + f32/bf16 dequant temps
    else:
      w = 2 * 3 * hd * tn * esz                      # double-buffered bf16 slabs
    return act + w

  while tm > 64 and working_set(tm) > vmem_mb * (1 << 20):
    tm //= 2
  tm = max(16, _round_up(tm, 16))
  return tm, tn, vmem_mb * (1 << 20)


# --------------------------------------------------------------------------
# pallas_call wrappers.
# --------------------------------------------------------------------------
@functools.partial(jax.jit, static_argnames=("tm", "tn", "vmem_limit_bytes"))
def mlp_forward_bf16(x, wgu_t, wd_t, *, tm, tn, vmem_limit_bytes):
  """Default path.  x: [B,S,hd]; wgu_t: [2, hd, m_pad] bf16; wd_t: [m_pad, hd]."""
  B, S, hd = x.shape
  m_pad = wgu_t.shape[-1]
  T = B * S
  Tp = _round_up(T, tm)
  x2 = x.reshape(T, hd)
  if Tp != T:
    x2 = jnp.pad(x2, ((0, Tp - T), (0, 0)))

  out = pl.pallas_call(
      _mlp_kernel_bf16,
      out_shape=jax.ShapeDtypeStruct((Tp, hd), x.dtype),
      grid_spec=pltpu.PrefetchScalarGridSpec(
          num_scalar_prefetch=0,
          grid=(Tp // tm, m_pad // tn),
          in_specs=[
              pl.BlockSpec((tm, hd), lambda i, j: (i, 0)),         # x tile
              pl.BlockSpec((2, hd, tn), lambda i, j: (0, 0, j)),   # gate+up slab
              pl.BlockSpec((tn, hd), lambda i, j: (j, 0)),         # down slab
          ],
          out_specs=pl.BlockSpec((tm, hd), lambda i, j: (i, 0)),
          scratch_shapes=[pltpu.VMEM((tm, hd), jnp.float32)],
      ),
      compiler_params=pltpu.CompilerParams(
          dimension_semantics=("parallel", "arbitrary"),
          vmem_limit_bytes=vmem_limit_bytes,
      ),
  )(x2, wgu_t, wd_t)

  if Tp != T:
    out = out[:T]
  return out.reshape(B, S, hd)


@functools.partial(jax.jit, static_argnames=("tm", "tn", "vmem_limit_bytes"))
def mlp_forward_nf4(x, gu_codes, gu_scales, d_codes, d_scales, *, tm, tn,
                    vmem_limit_bytes):
  """In-kernel NF4 dequant path (packed codes + absmax streamed, ~3.6x fewer
  weight HBM bytes; LUT/scale expansion on the VPU)."""
  B, S, hd = x.shape
  m_pad = gu_codes.shape[-1]
  T = B * S
  Tp = _round_up(T, tm)
  x2 = x.reshape(T, hd)
  if Tp != T:
    x2 = jnp.pad(x2, ((0, Tp - T), (0, 0)))
  hd2, hdb = hd // 2, hd // _NF4_BLOCKSIZE

  out = pl.pallas_call(
      _mlp_kernel_nf4,
      out_shape=jax.ShapeDtypeStruct((Tp, hd), x.dtype),
      grid_spec=pltpu.PrefetchScalarGridSpec(
          num_scalar_prefetch=0,
          grid=(Tp // tm, m_pad // tn),
          in_specs=[
              pl.BlockSpec((tm, hd), lambda i, j: (i, 0)),          # x tile
              pl.BlockSpec((2, hd2, tn), lambda i, j: (0, 0, j)),   # g+u codes
              pl.BlockSpec((2, hdb, tn), lambda i, j: (0, 0, j)),   # g+u absmax
              pl.BlockSpec((tn, hd2), lambda i, j: (j, 0)),         # down codes
              pl.BlockSpec((tn // _NF4_BLOCKSIZE, hd),
                           lambda i, j: (j, 0)),                    # down absmax
          ],
          out_specs=pl.BlockSpec((tm, hd), lambda i, j: (i, 0)),
          scratch_shapes=[pltpu.VMEM((tm, hd), jnp.float32)],
      ),
      compiler_params=pltpu.CompilerParams(
          dimension_semantics=("parallel", "arbitrary"),
          vmem_limit_bytes=vmem_limit_bytes,
      ),
  )(x2, gu_codes, gu_scales, d_codes, d_scales)

  if Tp != T:
    out = out[:T]
  return out.reshape(B, S, hd)


# --------------------------------------------------------------------------
# Demo / correctness check (small shapes; tune at production shapes instead).
# --------------------------------------------------------------------------
if __name__ == "__main__":
  # Small shapes consistent with the module; m deliberately NOT a multiple of
  # the m-tile so the padding path (ex-_pick_n_tile fallback) is exercised.
  B, S, hd, m = 2, 8, 256, 832
  compute_dtype = jnp.bfloat16   # TPU-native stand-in for torch.float16

  key = jax.random.PRNGKey(0)
  kx, kg, ku, kd = jax.random.split(key, 4)
  # PyTorch Linear weights are [out, in].
  wg = jax.random.normal(kg, (m, hd), dtype=jnp.float32) * 0.05
  wu = jax.random.normal(ku, (m, hd), dtype=jnp.float32) * 0.05
  wd = jax.random.normal(kd, (hd, m), dtype=jnp.float32) * 0.05
  x = jax.random.normal(kx, (B, S, hd), dtype=jnp.float32).astype(compute_dtype)
  T = B * S

  # Plain-JAX reference of the same NF4-quantized math (unpadded weights).
  wg_ref = nf4_dequantize(*nf4_quantize(wg)).T.astype(compute_dtype)
  wu_ref = nf4_dequantize(*nf4_quantize(wu)).T.astype(compute_dtype)
  wd_ref = nf4_dequantize(*nf4_quantize(wd)).T.astype(compute_dtype)
  xf = x.astype(jnp.float32)
  g_ref = xf @ wg_ref.astype(jnp.float32)
  u_ref = xf @ wu_ref.astype(jnp.float32)
  h_ref = (g_ref * jax.nn.sigmoid(g_ref)) * u_ref
  y_ref = (h_ref.astype(compute_dtype).astype(jnp.float32)
           @ wd_ref.astype(jnp.float32)).astype(compute_dtype)

  for nf4_in_kernel in (False, True):
    tm, tn, vmem = select_config(T, hd, m, nf4_in_kernel=nf4_in_kernel,
                                 compute_dtype=compute_dtype)
    m_pad = _round_up(m, tn)
    # Pad m with zero weights (quantize to the exact-zero NF4 code) so weight
    # slabs stay bounded for any m.
    wg_p = jnp.pad(wg, ((0, m_pad - m), (0, 0)))
    wu_p = jnp.pad(wu, ((0, m_pad - m), (0, 0)))
    wd_p = jnp.pad(wd, ((0, 0), (0, m_pad - m)))
    cg, sg = nf4_quantize(wg_p)
    cu, su = nf4_quantize(wu_p)
    cd, sd = nf4_quantize(wd_p)

    if nf4_in_kernel:
      gu_codes, gu_scales = pack_nf4_gate_up(cg, sg, cu, su)
      d_codes, d_scales = pack_nf4_down(cd, sd)
      y = mlp_forward_nf4(x, gu_codes, gu_scales, d_codes, d_scales,
                          tm=tm, tn=tn, vmem_limit_bytes=vmem)
    else:
      wgu_t = jnp.stack([nf4_dequantize(cg, sg).T,
                         nf4_dequantize(cu, su).T]).astype(compute_dtype)
      wd_t = nf4_dequantize(cd, sd).T.astype(compute_dtype)
      y = mlp_forward_bf16(x, wgu_t, wd_t, tm=tm, tn=tn,
                           vmem_limit_bytes=vmem)

    y = jax.block_until_ready(y)
    assert y.shape == (B, S, hd) and y.dtype == compute_dtype
    assert jnp.allclose(
        y.astype(jnp.float32), y_ref.astype(jnp.float32),
        atol=2e-2, rtol=2e-2
    ), f"mismatch vs reference (nf4_in_kernel={nf4_in_kernel})"

  print("KERNEL_OK")
</pallas_src>

<mosaic_0001>
module attributes {stable_mosaic.version = 11 : i64} {
  func.func @_mlp_kernel_bf16(%arg0: i32, %arg1: i32, %arg2: memref<16x256xbf16, #tpu.memory_space<vmem>>, %arg3: memref<2x256x512xbf16, #tpu.memory_space<vmem>>, %arg4: memref<512x256xbf16, #tpu.memory_space<vmem>>, %arg5: memref<16x256xbf16, #tpu.memory_space<vmem>>, %arg6: memref<16x256xf32, #tpu.memory_space<vmem>>) attributes {dimension_semantics = [#tpu.dimension_semantics<parallel>, #tpu.dimension_semantics<arbitrary>], iteration_bounds = array<i64: 1, 2>, scalar_prefetch = 0 : i64, scratch_operands = 1 : i64, tpu.core_type = #tpu.core_type<tc>, window_params = [{transform_indices = @transform_0, window_bounds = array<i64: 16, 256>}, {transform_indices = @transform_1, window_bounds = array<i64: 2, 256, 512>}, {transform_indices = @transform_2, window_bounds = array<i64: 512, 256>}, {transform_indices = @transform_3, window_bounds = array<i64: 16, 256>}]} {
    %c0_i32 = arith.constant 0 : i32
    %0 = arith.cmpi eq, %arg1, %c0_i32 : i32
    %1 = arith.extui %0 : i1 to i32
    %c0_i32_0 = arith.constant 0 : i32
    %2 = arith.cmpi ne, %1, %c0_i32_0 : i32
    scf.if %2 {
      %cst_17 = arith.constant 0.000000e+00 : f32
      %26 = vector.broadcast %cst_17 : f32 to vector<16x256xf32>
      %c0_18 = arith.constant 0 : index
      %c0_19 = arith.constant 0 : index
      %27 = vector.load %arg6[%c0_18, %c0_19] : memref<16x256xf32, #tpu.memory_space<vmem>>, vector<16x256xf32>
      tpu.vector_store %arg6[%c0_18, %c0_19], %26 {strides = array<i32>} : memref<16x256xf32, #tpu.memory_space<vmem>>, vector<16x256xf32>,
    } else {
    }
    %c0 = arith.constant 0 : index
    %c0_1 = arith.constant 0 : index
    %3 = vector.load %arg2[%c0, %c0_1] : memref<16x256xbf16, #tpu.memory_space<vmem>>, vector<16x256xbf16>
    %c0_2 = arith.constant 0 : index
    %c0_3 = arith.constant 0 : index
    %c0_4 = arith.constant 0 : index
    %4 = vector.load %arg3[%c0_2, %c0_3, %c0_4] : memref<2x256x512xbf16, #tpu.memory_space<vmem>>, vector<1x256x512xbf16>
    %5 = vector.shape_cast %4 : vector<1x256x512xbf16> to vector<256x512xbf16>
    %cst = arith.constant dense<0.000000e+00> : vector<16x512xf32>
    %6 = tpu.matmul %3, %5, %cst {dimension_numbers = #tpu.dot_dimension_numbers<[1], [0], [0], [1], [0, 0, 1, 1], [], []>} : vector<16x256xbf16>, vector<256x512xbf16>, vector<16x512xf32> -> vector<16x512xf32>
    %c1 = arith.constant 1 : index
    %c0_5 = arith.constant 0 : index
    %c0_6 = arith.constant 0 : index
    %7 = vector.load %arg3[%c1, %c0_5, %c0_6] : memref<2x256x512xbf16, #tpu.memory_space<vmem>>, vector<1x256x512xbf16>
    %8 = vector.shape_cast %7 : vector<1x256x512xbf16> to vector<256x512xbf16>
    %cst_7 = arith.constant dense<0.000000e+00> : vector<16x512xf32>
    %9 = tpu.matmul %3, %8, %cst_7 {dimension_numbers = #tpu.dot_dimension_numbers<[1], [0], [0], [1], [0, 0, 1, 1], [], []>} : vector<16x256xbf16>, vector<256x512xbf16>, vector<16x512xf32> -> vector<16x512xf32>
    %10 = arith.negf %6 : vector<16x512xf32>
    %11 = math.exp %10 : vector<16x512xf32>
    %cst_8 = arith.constant 1.000000e+00 : f32
    %12 = vector.broadcast %cst_8 : f32 to vector<16x512xf32>
    %13 = arith.addf %12, %11 : vector<16x512xf32>
    %14 = arith.divf %12, %13 : vector<16x512xf32>
    %15 = arith.mulf %6, %14 : vector<16x512xf32>
    %16 = arith.mulf %15, %9 : vector<16x512xf32>
    %17 = arith.truncf %16 : vector<16x512xf32> to vector<16x512xbf16>
    %c0_9 = arith.constant 0 : index
    %c0_10 = arith.constant 0 : index
    %18 = vector.load %arg6[%c0_9, %c0_10] : memref<16x256xf32, #tpu.memory_space<vmem>>, vector<16x256xf32>
    %c0_11 = arith.constant 0 : index
    %c0_12 = arith.constant 0 : index
    %19 = vector.load %arg4[%c0_11, %c0_12] : memref<512x256xbf16, #tpu.memory_space<vmem>>, vector<512x256xbf16>
    %cst_13 = arith.constant dense<0.000000e+00> : vector<16x256xf32>
    %20 = tpu.matmul %17, %19, %cst_13 {dimension_numbers = #tpu.dot_dimension_numbers<[1], [0], [0], [1], [0, 0, 1, 1], [], []>} : vector<16x512xbf16>, vector<512x256xbf16>, vector<16x256xf32> -> vector<16x256xf32>
    %21 = arith.addf %18, %20 : vector<16x256xf32>
    %c0_14 = arith.constant 0 : index
    %c0_15 = arith.constant 0 : index
    %22 = vector.load %arg6[%c0_14, %c0_15] : memref<16x256xf32, #tpu.memory_space<vmem>>, vector<16x256xf32>
    tpu.vector_store %arg6[%c0_14, %c0_15], %21 {strides = array<i32>} : memref<16x256xf32, #tpu.memory_space<vmem>>, vector<16x256xf32>,
    %c1_i32 = arith.constant 1 : i32
    %23 = arith.cmpi eq, %arg1, %c1_i32 : i32
    %24 = arith.extui %23 : i1 to i32
    %c0_i32_16 = arith.constant 0 : i32
    %25 = arith.cmpi ne, %24, %c0_i32_16 : i32
    scf.if %25 {
      %c0_17 = arith.constant 0 : index
      %c0_18 = arith.constant 0 : index
      %26 = vector.load %arg6[%c0_17, %c0_18] : memref<16x256xf32, #tpu.memory_space<vmem>>, vector<16x256xf32>
      %27 = arith.truncf %26 : vector<16x256xf32> to vector<16x256xbf16>
      %c0_19 = arith.constant 0 : index
      %c0_20 = arith.constant 0 : index
      %28 = vector.load %arg5[%c0_19, %c0_20] : memref<16x256xbf16, #tpu.memory_space<vmem>>, vector<16x256xbf16>
      tpu.vector_store %arg5[%c0_19, %c0_20], %27 {strides = array<i32>} : memref<16x256xbf16, #tpu.memory_space<vmem>>, vector<16x256xbf16>,
    } else {
    }
    return
  }
  func.func @transform_0(%arg0: i32, %arg1: i32) -> (i32, i32) {
    %c0_i32 = arith.constant 0 : i32
    %c0_i32_0 = arith.constant 0 : i32
    return %arg0, %c0_i32 : i32, i32
  }
  func.func @transform_1(%arg0: i32, %arg1: i32) -> (i32, i32, i32) {
    %c0_i32 = arith.constant 0 : i32
    %c0_i32_0 = arith.constant 0 : i32
    %c0_i32_1 = arith.constant 0 : i32
    return %c0_i32, %c0_i32_0, %arg1 : i32, i32, i32
  }
  func.func @transform_2(%arg0: i32, %arg1: i32) -> (i32, i32) {
    %c0_i32 = arith.constant 0 : i32
    %c0_i32_0 = arith.constant 0 : i32
    return %arg1, %c0_i32 : i32, i32
  }
  func.func @transform_3(%arg0: i32, %arg1: i32) -> (i32, i32) {
    %c0_i32 = arith.constant 0 : i32
    %c0_i32_0 = arith.constant 0 : i32
    return %arg0, %c0_i32 : i32, i32
  }
}

</mosaic_0001>

<llo_original>
// kernel: mlp_forward_bf16.1
$region0: #{mlp_forward_bf16.1}
  #allocation0 [shape = 'u32[]', space=smem, size = 0x4, offset = 0x4, fixed_abs, tag = 'smem constant byte address 0x4 - core index']
  #allocation1 [shape = 'u32[144,128]{1,0:T(1,128)}', space=vmem, size = 0x12000, scoped, tag = 'internal scratch']
  #allocation2 [shape = 'f32[16,256]{1,0:T(8,128)}', space=vmem, size = 0x4000, scoped, tag = 'scratch operand']
  %s0 = inlined_call_operand.hbm [shape: bf16[16,256], index: 0, kind: input, shape index: {}]
  %s1 = inlined_call_operand.hbm [shape: bf16[2,256,1024], index: 1, kind: input, shape index: {}]
  %s2 = inlined_call_operand.hbm [shape: bf16[1024,256], index: 2, kind: input, shape index: {}]
  %s3 = inlined_call_operand.hbm [shape: bf16[16,256], index: 3, kind: output, shape index: {}]
  %s4 = sld [smem:[#allocation0]]
  $region65: #{mlp_forward_bf16.1} parent=0
    _
  %s6 = ssub.s32 1, %s4
  %s7 = scalar_select 0, %s6, %s4
  $region1: #{mlp_forward_bf16.1} parent=0
    #allocation3 [shape = 'u8[8192]{0}', space=vmem, size = 0x2000, scoped, tag = 'input window, operand 0, single buffered']
    #allocation4 [shape = 's32[2]{0}', space=sflag, size = 0x8, scoped, tag = 'scoped memory for mlp_forward_bf16.1']
    #allocation5 [shape = 's32[2]{0}', space=sflag, size = 0x8, scoped, tag = 'scoped memory for mlp_forward_bf16.1']
    #allocation6 [shape = 'u8[1048576]{0}', space=vmem, size = 0x100000, scoped, tag = 'input window, operand 1']
    #allocation7 [shape = 's32[2]{0}', space=sflag, size = 0x8, scoped, tag = 'scoped memory for mlp_forward_bf16.1']
    #allocation8 [shape = 'u8[524288]{0}', space=vmem, size = 0x80000, scoped, tag = 'input window, operand 2']
    #allocation9 [shape = 'u8[8192]{0}', space=vmem, size = 0x2000, scoped, tag = 'output window, operand 0, single buffered']
    %8 = vsyncpa [#allocation4], 0
    %9 = vsyncpa [#allocation7], 0
    %s10 = scalar_lea.sflag [#allocation7], 1
    %11 = vsyncpa %s10, 0
    %12 = vsyncpa [#allocation5], 0
    loop: start=0, step=1, limit=4
    $region2: #{mlp_forward_bf16.1} parent=1 // loop_pre_header
      _
    $region3: #{mlp_forward_bf16.1} parent=1 // loop_header
      %s14 = sphi 0, %s18
      %p15 = scmp.ge.s32.totalorder %s14, 4
      %s21 = sphi 0, %s33
      %s22 = sphi 0, %s29
      %s23 = sphi 0, %s21
      %s24 = sphi 0, %s22
      %s25 = sphi 0, %s23
      %s26 = sphi 0, %s24
      %s36 = sphi 0, %s38
      %s39 = sphi 0, %s36
      %s40 = sphi 0, %s39
      %s56 = sphi 0, %s40
      %s62 = sphi 0, %s64
      %s65 = sphi 0, %s62
      %s66 = sphi 0, %s65
      %s82 = sphi 0, %s66
      %s88 = sphi 0, %s90
      %s91 = sphi 0, %s88
      %s92 = sphi 0, %s91
      %s108 = sphi 0, %s92
      %s114 = sphi 0, %s116
      %s117 = sphi 0, %s114
      %s118 = sphi 0, %s117
      %s134 = sphi 0, %s118
    $region4: #{mlp_forward_bf16.1} parent=1 // loop_header_branch
      %17 = sbr.rel (%p15) target = $region8
    $region5: #{mlp_forward_bf16.1} parent=1 // loop_body
      %s19 = ssub.s32 %s14, 1
      %s20 = ssub.s32 %s14, 2
      %s27 = sadd.s32 1, %s22
      %p28 = scmp.ge.s32.totalorder %s27, 2
      %s29 = scalar_select %p28, 0, %s27
      %s30 = sadd.s32 1, %s21
      %s31 = scalar_select %p28, %s30, %s21
      %p32 = scmp.ge.s32.totalorder %s31, 1
      %s33 = scalar_select %p32, 0, %s31
      %s34 = ssub.s32 %s21, %s33
      %p35 = scmp.eq.s32.totalorder %s34, 0
      %s37 = sadd.s32 %s36, 1
      %s38 = scalar_select %p35, %s36, %s37
      %p41 = pneg %p35
      %p42 = scmp.eq.s32.totalorder %s14, 1
      %p43 = por %p41, %p42
      %p44 = scmp.ne.s32.totalorder %s36, %s39
      %p45 = scmp.eq.s32.totalorder %s14, 0
      %p46 = por %p44, %p45
      %p47 = scmp.ne.s32.totalorder %s36, %s39
      %p48 = scmp.eq.s32.totalorder %s19, 1
      %p49 = por %p47, %p48
      %p50 = scmp.ne.s32.totalorder %s39, %s40
      %p51 = scmp.eq.s32.totalorder %s19, 0
      %p52 = por %p50, %p51
      %p53 = scmp.ne.s32.totalorder %s39, %s40
      %p54 = scmp.eq.s32.totalorder %s20, 1
      %p55 = por %p53, %p54
      %p57 = scmp.ne.s32.totalorder %s40, %s56
      %p58 = scmp.eq.s32.totalorder %s20, 0
      %p59 = por %p57, %p58
      %s60 = ssub.s32 %s22, %s29
      %p61 = scmp.eq.s32.totalorder %s60, 0
      %s63 = sadd.s32 %s62, 1
      %s64 = scalar_select %p61, %s62, %s63
      %p67 = pneg %p61
      %p68 = scmp.eq.s32.totalorder %s14, 1
      %p69 = por %p67, %p68
      %p70 = scmp.ne.s32.totalorder %s62, %s65
      %p71 = scmp.eq.s32.totalorder %s14, 0
      %p72 = por %p70, %p71
      %p73 = scmp.ne.s32.totalorder %s62, %s65
      %p74 = scmp.eq.s32.totalorder %s19, 1
      %p75 = por %p73, %p74
      %p76 = scmp.ne.s32.totalorder %s65, %s66
      %p77 = scmp.eq.s32.totalorder %s19, 0
      %p78 = por %p76, %p77
      %p79 = scmp.ne.s32.totalorder %s65, %s66
      %p80 = scmp.eq.s32.totalorder %s20, 1
      %p81 = por %p79, %p80
      %p83 = scmp.ne.s32.totalorder %s66, %s82
      %p84 = scmp.eq.s32.totalorder %s20, 0
      %p85 = por %p83, %p84
      %s86 = ssub.s32 %s22, %s29
      %p87 = scmp.eq.s32.totalorder %s86, 0
      %s89 = sadd.s32 %s88, 1
      %s90 = scalar_select %p87, %s88, %s89
      %p93 = pneg %p87
      %p94 = scmp.eq.s32.totalorder %s14, 1
      %p95 = por %p93, %p94
      %p96 = scmp.ne.s32.totalorder %s88, %s91
      %p97 = scmp.eq.s32.totalorder %s14, 0
      %p98 = por %p96, %p97
      %p99 = scmp.ne.s32.totalorder %s88, %s91
      %p100 = scmp.eq.s32.totalorder %s19, 1
      %p101 = por %p99, %p100
      %p102 = scmp.ne.s32.totalorder %s91, %s92
      %p103 = scmp.eq.s32.totalorder %s19, 0
      %p104 = por %p102, %p103
      %p105 = scmp.ne.s32.totalorder %s91, %s92
      %p106 = scmp.eq.s32.totalorder %s20, 1
      %p107 = por %p105, %p106
      %p109 = scmp.ne.s32.totalorder %s92, %s108
      %p110 = scmp.eq.s32.totalorder %s20, 0
      %p111 = por %p109, %p110
      %s112 = ssub.s32 %s21, %s33
      %p113 = scmp.eq.s32.totalorder %s112, 0
      %s115 = sadd.s32 %s114, 1
      %s116 = scalar_select %p113, %s114, %s115
      %p119 = pneg %p113
      %p120 = scmp.eq.s32.totalorder %s14, 1
      %p121 = por %p119, %p120
      %p122 = scmp.ne.s32.totalorder %s114, %s117
      %p123 = scmp.eq.s32.totalorder %s14, 0
      %p124 = por %p122, %p123
      %p125 = scmp.ne.s32.totalorder %s114, %s117
      %p126 = scmp.eq.s32.totalorder %s19, 1
      %p127 = por %p125, %p126
      %p128 = scmp.ne.s32.totalorder %s117, %s118
      %p129 = scmp.eq.s32.totalorder %s19, 0
      %p130 = por %p128, %p129
      %p131 = scmp.ne.s32.totalorder %s117, %s118
      %p132 = scmp.eq.s32.totalorder %s20, 1
      %p133 = por %p131, %p132
      %p135 = scmp.ne.s32.totalorder %s118, %s134
      %p136 = scmp.eq.s32.totalorder %s20, 0
      %p137 = por %p135, %p136
      %p138 = scmp.le.s32.totalorder 1, %s14
      %p139 = scmp.lt.s32.totalorder %s14, 3
      %p140 = pnand %p138, %p139
      %p141 = pneg %p140
      // Predicated region
      $region9: #{mlp_forward_bf16.1} parent=5 // pred_check
        _
      $region10: #{mlp_forward_bf16.1} parent=5 // pred_check_branch
        %143 = sbr.rel (%p140) target = $region12
      $region11: #{mlp_forward_bf16.1} parent=5 // pred_region
        %s144 = ssub.s32 %s14, 1
        // Predicated region
        $region13: #{mlp_forward_bf16.1} parent=11 // pred_check
          %p145 = pneg %p52
        $region14: #{mlp_forward_bf16.1} parent=11 // pred_check_branch
          %147 = sbr.rel (%p145) target = $region16
        $region15: #{mlp_forward_bf16.1} parent=11 // pred_region
          %s148 = smul.u32 2, %s23
          %s150 = ssub.s32 256, 256
          %151 = vsyncadd [#allocation4], %s150
          %s152 = smul.addr %s148, 2
          %s153 = smul.addr %s152, 64
          %s154 = scalar_lea.hbm %s0, %s153
          %s155 = sshll.u32 [#allocation3], 4
          %s156 = int_to_ptr.vmem [resolvable:$true] %s155
          %161 = dma.hbm_to_vmem [thread:$0]  %s154, 256, %s156, [#allocation4], 128, 128, 8
        $region16: #{mlp_forward_bf16.1} parent=11 // pred_fallthru
          _
      $region12: #{mlp_forward_bf16.1} parent=5 // pred_fallthru
        _
      %p162 = scmp.lt.s32.totalorder %s14, 2
      // Predicated region
      $region17: #{mlp_forward_bf16.1} parent=5 // pred_check
        %p163 = pneg %p162
      $region18: #{mlp_forward_bf16.1} parent=5 // pred_check_branch
        %165 = sbr.rel (%p163) target = $region20
      $region19: #{mlp_forward_bf16.1} parent=5 // pred_region
        // Predicated region
        $region21: #{mlp_forward_bf16.1} parent=19 // pred_check
          %p166 = pneg %p72
        $region22: #{mlp_forward_bf16.1} parent=19 // pred_check_branch
          %168 = sbr.rel (%p166) target = $region24
        $region23: #{mlp_forward_bf16.1} parent=19 // pred_region
          %s169 = sand.u32 %s14, 1
          %s170 = scalar_lea.sflag [#allocation7], %s169
          %s171 = sand.u32 %s62, 1
          %s172 = smul.addr %s171, 1024
          %s173 = scalar_lea.vmem [#allocation6], %s172
          %s174 = smul.u32 4, %s22
          %s176 = ssub.s32 16384, 16384
          %177 = vsyncadd %s170, %s176
          %s178 = smul.addr %s174, 64
          %s179 = scalar_lea.hbm %s1, %s178
          %s180 = sshll.u32 %s173, 4
          %s181 = int_to_ptr.vmem [resolvable:$true] %s180
          %186 = dma.hbm_to_vmem [thread:$0]  %s179, 16384, %s181, %s170, 512, 256, 16
        $region24: #{mlp_forward_bf16.1} parent=19 // pred_fallthru
          _
        // Predicated region
        $region25: #{mlp_forward_bf16.1} parent=19 // pred_check
          %p187 = pneg %p98
        $region26: #{mlp_forward_bf16.1} parent=19 // pred_check_branch
          %189 = sbr.rel (%p187) target = $region28
        $region27: #{mlp_forward_bf16.1} parent=19 // pred_region
          %s190 = sand.u32 %s14, 1
          %s191 = scalar_lea.sflag [#allocation7], %s190
          %s192 = sand.u32 %s88, 1
          %s193 = smul.addr %s192, 512
          %s194 = scalar_lea.vmem [#allocation8], %s193
          %s195 = smul.u32 64, %s22
          %s197 = ssub.s32 8192, 8192
          %198 = vsyncadd %s191, %s197
          %s199 = smul.addr %s195, 2
          %s200 = smul.addr %s199, 64
          %s201 = scalar_lea.hbm %s2, %s200
          %s202 = sshll.u32 %s194, 4
          %s203 = int_to_ptr.vmem [resolvable:$true] %s202
          %208 = dma.hbm_to_vmem [thread:$0]  %s201, 8192, %s203, %s191, 128, 128, 8
        $region28: #{mlp_forward_bf16.1} parent=19 // pred_fallthru
          _
      $region20: #{mlp_forward_bf16.1} parent=5 // pred_fallthru
        _
      %p209 = scmp.le.s32.totalorder 1, %s14
      %p210 = scmp.lt.s32.totalorder %s14, 3
      %p211 = pnand %p209, %p210
      %p212 = pneg %p211
      // Predicated region
      $region29: #{mlp_forward_bf16.1} parent=5 // pred_check
        _
      $region30: #{mlp_forward_bf16.1} parent=5 // pred_check_branch
        %214 = sbr.rel (%p211) target = $region32
      $region31: #{mlp_forward_bf16.1} parent=5 // pred_region
        %s215 = ssub.s32 %s14, 1
        // Predicated region
        $region33: #{mlp_forward_bf16.1} parent=31 // pred_check
          %p216 = pneg %p52
        $region34: #{mlp_forward_bf16.1} parent=31 // pred_check_branch
          %218 = sbr.rel (%p216) target = $region36
        $region35: #{mlp_forward_bf16.1} parent=31 // pred_region
          %219 = dma.done [#allocation4], 256
        $region36: #{mlp_forward_bf16.1} parent=31 // pred_fallthru
          _
        %s220 = sand.u32 %s19, 1
        %s221 = scalar_lea.sflag [#allocation7], %s220
        %s222 = sand.u32 %s65, 1
        %s223 = smul.addr %s222, 1024
        %s224 = scalar_lea.vmem [#allocation6], %s223
        // Predicated region
        $region37: #{mlp_forward_bf16.1} parent=31 // pred_check
          %p225 = pneg %p78
        $region38: #{mlp_forward_bf16.1} parent=31 // pred_check_branch
          %227 = sbr.rel (%p225) target = $region40
        $region39: #{mlp_forward_bf16.1} parent=31 // pred_region
          %228 = dma.done %s221, 16384
        $region40: #{mlp_forward_bf16.1} parent=31 // pred_fallthru
          _
        %s229 = sand.u32 %s19, 1
        %s230 = scalar_lea.sflag [#allocation7], %s229
        %s231 = sand.u32 %s91, 1
        %s232 = smul.addr %s231, 512
        %s233 = scalar_lea.vmem [#allocation8], %s232
        // Predicated region
        $region41: #{mlp_forward_bf16.1} parent=31 // pred_check
          %p234 = pneg %p104
        $region42: #{mlp_forward_bf16.1} parent=31 // pred_check_branch
          %236 = sbr.rel (%p234) target = $region44
        $region43: #{mlp_forward_bf16.1} parent=31 // pred_region
          %237 = dma.done %s230, 8192
        $region44: #{mlp_forward_bf16.1} parent=31 // pred_fallthru
          _
        %p238 = pneg %p52
        %p239 = pneg %p49
        %s240 = sand.u32 %s19, 1
        %s241 = scalar_lea.sflag [#allocation7], %s240
        %s242 = sand.u32 %s65, 1
        %s243 = smul.addr %s242, 1024
        %s244 = scalar_lea.vmem [#allocation6], %s243
        %p245 = pneg %p78
        %p246 = pneg %p75
        %s247 = sand.u32 %s19, 1
        %s248 = scalar_lea.sflag [#allocation7], %s247
        %s249 = sand.u32 %s91, 1
        %s250 = smul.addr %s249, 512
        %s251 = scalar_lea.vmem [#allocation8], %s250
        %p252 = pneg %p104
        %p253 = pneg %p101
        %p254 = pneg %p130
        %p255 = pneg %p127
        %s256 = smul.u32 2, %s23
        %s257 = smul.u32 4, %s24
        %s258 = smul.u32 64, %s24
        %s259 = smul.u32 2, %s23
        %p260 = scmp.eq.s32.totalorder %s24, 0
        // Predicated region
        $region45: #{mlp_forward_bf16.1} parent=31 // pred_check
          %p261 = pneg %p260
        $region46: #{mlp_forward_bf16.1} parent=31 // pred_check_branch
          %263 = sbr.rel (%p261) target = $region48
        $region47: #{mlp_forward_bf16.1} parent=31 // pred_region
          %264 = vst [vmem:[#allocation2] sm:$0xff] 0.0
          %265 = vst [vmem:[#allocation2 + $0x8] sm:$0xff] 0.0
          %266 = vst [vmem:[#allocation2 + $0x10] sm:$0xff] 0.0
          %267 = vst [vmem:[#allocation2 + $0x18] sm:$0xff] 0.0
        $region48: #{mlp_forward_bf16.1} parent=31 // pred_fallthru
          _
        %v268 = vld [vmem:[#allocation3] sm:$0xff]
        %v269 = vld [vmem:[#allocation3 + $0x8] sm:$0xff]
        %v270 = vld [vmem:[%s224] sm:$0xff]
        %v271 = vld [vmem:[%s224 + $0x8] sm:$0xff]
        %v272 = vld [vmem:[%s224 + $0x10] sm:$0xff]
        %v273 = vld [vmem:[%s224 + $0x18] sm:$0xff]
        %v274 = vld [vmem:[%s224 + $0x20] sm:$0xff]
        %v275 = vld [vmem:[%s224 + $0x28] sm:$0xff]
        %v276 = vld [vmem:[%s224 + $0x30] sm:$0xff]
        %v277 = vld [vmem:[%s224 + $0x38] sm:$0xff]
        %v278 = vld [vmem:[%s224 + $0x40] sm:$0xff]
        %v279 = vld [vmem:[%s224 + $0x48] sm:$0xff]
        %v280 = vld [vmem:[%s224 + $0x50] sm:$0xff]
        %v281 = vld [vmem:[%s224 + $0x58] sm:$0xff]
        %v282 = vld [vmem:[%s224 + $0x60] sm:$0xff]
        %v283 = vld [vmem:[%s224 + $0x68] sm:$0xff]
        %v284 = vld [vmem:[%s224 + $0x70] sm:$0xff]
        %v285 = vld [vmem:[%s224 + $0x78] sm:$0xff]
        %v286 = vld [vmem:[%s224 + $0x80] sm:$0xff]
        %v287 = vld [vmem:[%s224 + $0x88] sm:$0xff]
        %v288 = vld [vmem:[%s224 + $0x90] sm:$0xff]
        %v289 = vld [vmem:[%s224 + $0x98] sm:$0xff]
        %v290 = vld [vmem:[%s224 + $0xa0] sm:$0xff]
        %v291 = vld [vmem:[%s224 + $0xa8] sm:$0xff]
        %v292 = vld [vmem:[%s224 + $0xb0] sm:$0xff]
        %v293 = vld [vmem:[%s224 + $0xb8] sm:$0xff]
        %v294 = vld [vmem:[%s224 + $0xc0] sm:$0xff]
        %v295 = vld [vmem:[%s224 + $0xc8] sm:$0xff]
        %v296 = vld [vmem:[%s224 + $0xd0] sm:$0xff]
        %v297 = vld [vmem:[%s224 + $0xd8] sm:$0xff]
        %v298 = vld [vmem:[%s224 + $0xe0] sm:$0xff]
        %v299 = vld [vmem:[%s224 + $0xe8] sm:$0xff]
        %v300 = vld [vmem:[%s224 + $0xf0] sm:$0xff]
        %v301 = vld [vmem:[%s224 + $0xf8] sm:$0xff]
        %v302 = vld [vmem:[%s224 + $0x100] sm:$0xff]
        %v303 = vld [vmem:[%s224 + $0x108] sm:$0xff]
        %v304 = vld [vmem:[%s224 + $0x110] sm:$0xff]
        %v305 = vld [vmem:[%s224 + $0x118] sm:$0xff]
        %v306 = vld [vmem:[%s224 + $0x120] sm:$0xff]
        %v307 = vld [vmem:[%s224 + $0x128] sm:$0xff]
        %v308 = vld [vmem:[%s224 + $0x130] sm:$0xff]
        %v309 = vld [vmem:[%s224 + $0x138] sm:$0xff]
        %v310 = vld [vmem:[%s224 + $0x140] sm:$0xff]
        %v311 = vld [vmem:[%s224 + $0x148] sm:$0xff]
        %v312 = vld [vmem:[%s224 + $0x150] sm:$0xff]
        %v313 = vld [vmem:[%s224 + $0x158] sm:$0xff]
        %v314 = vld [vmem:[%s224 + $0x160] sm:$0xff]
        %v315 = vld [vmem:[%s224 + $0x168] sm:$0xff]
        %v316 = vld [vmem:[%s224 + $0x170] sm:$0xff]
        %v317 = vld [vmem:[%s224 + $0x178] sm:$0xff]
        %v318 = vld [vmem:[%s224 + $0x180] sm:$0xff]
        %v319 = vld [vmem:[%s224 + $0x188] sm:$0xff]
        %v320 = vld [vmem:[%s224 + $0x190] sm:$0xff]
        %v321 = vld [vmem:[%s224 + $0x198] sm:$0xff]
        %v322 = vld [vmem:[%s224 + $0x1a0] sm:$0xff]
        %v323 = vld [vmem:[%s224 + $0x1a8] sm:$0xff]
        %v324 = vld [vmem:[%s224 + $0x1b0] sm:$0xff]
        %v325 = vld [vmem:[%s224 + $0x1b8] sm:$0xff]
        %v326 = vld [vmem:[%s224 + $0x1c0] sm:$0xff]
        %v327 = vld [vmem:[%s224 + $0x1c8] sm:$0xff]
        %v328 = vld [vmem:[%s224 + $0x1d0] sm:$0xff]
        %v329 = vld [vmem:[%s224 + $0x1d8] sm:$0xff]
        %v330 = vld [vmem:[%s224 + $0x1e0] sm:$0xff]
        %v331 = vld [vmem:[%s224 + $0x1e8] sm:$0xff]
        %v332 = vld [vmem:[%s224 + $0x1f0] sm:$0xff]
        %v333 = vld [vmem:[%s224 + $0x1f8] sm:$0xff]
        %v336 = vunpack.c.l.b16 %v268
        %v337 = vunpack.c.h.b16 %v268
        %v338 = vunpack.c.l.b16 %v269
        %v339 = vunpack.c.h.b16 %v269
        %v340 = vpack.c.b16 %v338, %v336
        %v341 = vpack.c.b16 %v339, %v337
        %v408 = vunpack.c.l.b16 %v270
        %v409 = vunpack.c.h.b16 %v270
        %v410 = vunpack.c.l.b16 %v271
        %v411 = vunpack.c.h.b16 %v271
        %v412 = vunpack.c.l.b16 %v272
        %v413 = vunpack.c.h.b16 %v272
        %v414 = vunpack.c.l.b16 %v273
        %v415 = vunpack.c.h.b16 %v273
        %v416 = vunpack.c.l.b16 %v274
        %v417 = vunpack.c.h.b16 %v274
        %v418 = vunpack.c.l.b16 %v275
        %v419 = vunpack.c.h.b16 %v275
        %v420 = vunpack.c.l.b16 %v276
        %v421 = vunpack.c.h.b16 %v276
        %v422 = vunpack.c.l.b16 %v277
        %v423 = vunpack.c.h.b16 %v277
        %v424 = vunpack.c.l.b16 %v278
        %v425 = vunpack.c.h.b16 %v278
        %v426 = vunpack.c.l.b16 %v279
        %v427 = vunpack.c.h.b16 %v279
        %v428 = vunpack.c.l.b16 %v280
        %v429 = vunpack.c.h.b16 %v280
        %v430 = vunpack.c.l.b16 %v281
        %v431 = vunpack.c.h.b16 %v281
        %v432 = vunpack.c.l.b16 %v282
        %v433 = vunpack.c.h.b16 %v282
        %v434 = vunpack.c.l.b16 %v283
        %v435 = vunpack.c.h.b16 %v283
        %v436 = vunpack.c.l.b16 %v284
        %v437 = vunpack.c.h.b16 %v284
        %v438 = vunpack.c.l.b16 %v285
        %v439 = vunpack.c.h.b16 %v285
        %v440 = vunpack.c.l.b16 %v286
        %v441 = vunpack.c.h.b16 %v286
        %v442 = vunpack.c.l.b16 %v287
        %v443 = vunpack.c.h.b16 %v287
        %v444 = vunpack.c.l.b16 %v288
        %v445 = vunpack.c.h.b16 %v288
        %v446 = vunpack.c.l.b16 %v289
        %v447 = vunpack.c.h.b16 %v289
        %v448 = vunpack.c.l.b16 %v290
        %v449 = vunpack.c.h.b16 %v290
        %v450 = vunpack.c.l.b16 %v291
        %v451 = vunpack.c.h.b16 %v291
        %v452 = vunpack.c.l.b16 %v292
        %v453 = vunpack.c.h.b16 %v292
        %v454 = vunpack.c.l.b16 %v293
        %v455 = vunpack.c.h.b16 %v293
        %v456 = vunpack.c.l.b16 %v294
        %v457 = vunpack.c.h.b16 %v294
        %v458 = vunpack.c.l.b16 %v295
        %v459 = vunpack.c.h.b16 %v295
        %v460 = vunpack.c.l.b16 %v296
        %v461 = vunpack.c.h.b16 %v296
        %v462 = vunpack.c.l.b16 %v297
        %v463 = vunpack.c.h.b16 %v297
        %v464 = vunpack.c.l.b16 %v298
        %v465 = vunpack.c.h.b16 %v298
        %v466 = vunpack.c.l.b16 %v299
        %v467 = vunpack.c.h.b16 %v299
        %v468 = vunpack.c.l.b16 %v300
        %v469 = vunpack.c.h.b16 %v300
        %v470 = vunpack.c.l.b16 %v301
        %v471 = vunpack.c.h.b16 %v301
        %v472 = vunpack.c.l.b16 %v302
        %v473 = vunpack.c.h.b16 %v302
        %v474 = vunpack.c.l.b16 %v303
        %v475 = vunpack.c.h.b16 %v303
        %v476 = vunpack.c.l.b16 %v304
        %v477 = vunpack.c.h.b16 %v304
        %v478 = vunpack.c.l.b16 %v305
        %v479 = vunpack.c.h.b16 %v305
        %v480 = vunpack.c.l.b16 %v306
        %v481 = vunpack.c.h.b16 %v306
        %v482 = vunpack.c.l.b16 %v307
        %v483 = vunpack.c.h.b16 %v307
        %v484 = vunpack.c.l.b16 %v308
        %v485 = vunpack.c.h.b16 %v308
        %v486 = vunpack.c.l.b16 %v309
        %v487 = vunpack.c.h.b16 %v309
        %v488 = vunpack.c.l.b16 %v310
        %v489 = vunpack.c.h.b16 %v310
        %v490 = vunpack.c.l.b16 %v311
        %v491 = vunpack.c.h.b16 %v311
        %v492 = vunpack.c.l.b16 %v312
        %v493 = vunpack.c.h.b16 %v312
        %v494 = vunpack.c.l.b16 %v313
        %v495 = vunpack.c.h.b16 %v313
        %v496 = vunpack.c.l.b16 %v314
        %v497 = vunpack.c.h.b16 %v314
        %v498 = vunpack.c.l.b16 %v315
        %v499 = vunpack.c.h.b16 %v315
        %v500 = vunpack.c.l.b16 %v316
        %v501 = vunpack.c.h.b16 %v316
        %v502 = vunpack.c.l.b16 %v317
        %v503 = vunpack.c.h.b16 %v317
        %v504 = vunpack.c.l.b16 %v318
        %v505 = vunpack.c.h.b16 %v318
        %v506 = vunpack.c.l.b16 %v319
        %v507 = vunpack.c.h.b16 %v319
        %v508 = vunpack.c.l.b16 %v320
        %v509 = vunpack.c.h.b16 %v320
        %v510 = vunpack.c.l.b16 %v321
        %v511 = vunpack.c.h.b16 %v321
        %v512 = vunpack.c.l.b16 %v322
        %v513 = vunpack.c.h.b16 %v322
        %v514 = vunpack.c.l.b16 %v323
        %v515 = vunpack.c.h.b16 %v323
        %v516 = vunpack.c.l.b16 %v324
        %v517 = vunpack.c.h.b16 %v324
        %v518 = vunpack.c.l.b16 %v325
        %v519 = vunpack.c.h.b16 %v325
        %v520 = vunpack.c.l.b16 %v326
        %v521 = vunpack.c.h.b16 %v326
        %v522 = vunpack.c.l.b16 %v327
        %v523 = vunpack.c.h.b16 %v327
        %v524 = vunpack.c.l.b16 %v328
        %v525 = vunpack.c.h.b16 %v328
        %v526 = vunpack.c.l.b16 %v329
        %v527 = vunpack.c.h.b16 %v329
        %v528 = vunpack.c.l.b16 %v330
        %v529 = vunpack.c.h.b16 %v330
        %v530 = vunpack.c.l.b16 %v331
        %v531 = vunpack.c.h.b16 %v331
        %v532 = vunpack.c.l.b16 %v332
        %v533 = vunpack.c.h.b16 %v332
        %v534 = vunpack.c.l.b16 %v333
        %v535 = vunpack.c.h.b16 %v333
        %v536 = vpack.c.b16 %v412, %v408
        %v537 = vpack.c.b16 %v413, %v409
        %v538 = vpack.c.b16 %v414, %v410
        %v539 = vpack.c.b16 %v415, %v411
        %v540 = vpack.c.b16 %v420, %v416
        %v541 = vpack.c.b16 %v421, %v417
        %v542 = vpack.c.b16 %v422, %v418
        %v543 = vpack.c.b16 %v423, %v419
        %v544 = vpack.c.b16 %v428, %v424
        %v545 = vpack.c.b16 %v429, %v425
        %v546 = vpack.c.b16 %v430, %v426
        %v547 = vpack.c.b16 %v431, %v427
        %v548 = vpack.c.b16 %v436, %v432
        %v549 = vpack.c.b16 %v437, %v433
        %v550 = vpack.c.b16 %v438, %v434
        %v551 = vpack.c.b16 %v439, %v435
        %v552 = vpack.c.b16 %v444, %v440
        %v553 = vpack.c.b16 %v445, %v441
        %v554 = vpack.c.b16 %v446, %v442
        %v555 = vpack.c.b16 %v447, %v443
        %v556 = vpack.c.b16 %v452, %v448
        %v557 = vpack.c.b16 %v453, %v449
        %v558 = vpack.c.b16 %v454, %v450
        %v559 = vpack.c.b16 %v455, %v451
        %v560 = vpack.c.b16 %v460, %v456
        %v561 = vpack.c.b16 %v461, %v457
        %v562 = vpack.c.b16 %v462, %v458
        %v563 = vpack.c.b16 %v463, %v459
        %v564 = vpack.c.b16 %v468, %v464
        %v565 = vpack.c.b16 %v469, %v465
        %v566 = vpack.c.b16 %v470, %v466
        %v567 = vpack.c.b16 %v471, %v467
        %v568 = vpack.c.b16 %v476, %v472
        %v569 = vpack.c.b16 %v477, %v473
        %v570 = vpack.c.b16 %v478, %v474
        %v571 = vpack.c.b16 %v479, %v475
        %v572 = vpack.c.b16 %v484, %v480
        %v573 = vpack.c.b16 %v485, %v481
        %v574 = vpack.c.b16 %v486, %v482
        %v575 = vpack.c.b16 %v487, %v483
        %v576 = vpack.c.b16 %v492, %v488
        %v577 = vpack.c.b16 %v493, %v489
        %v578 = vpack.c.b16 %v494, %v490
        %v579 = vpack.c.b16 %v495, %v491
        %v580 = vpack.c.b16 %v500, %v496
        %v581 = vpack.c.b16 %v501, %v497
        %v582 = vpack.c.b16 %v502, %v498
        %v583 = vpack.c.b16 %v503, %v499
        %v584 = vpack.c.b16 %v508, %v504
        %v585 = vpack.c.b16 %v509, %v505
        %v586 = vpack.c.b16 %v510, %v506
        %v587 = vpack.c.b16 %v511, %v507
        %v588 = vpack.c.b16 %v516, %v512
        %v589 = vpack.c.b16 %v517, %v513
        %v590 = vpack.c.b16 %v518, %v514
        %v591 = vpack.c.b16 %v519, %v515
        %v592 = vpack.c.b16 %v524, %v520
        %v593 = vpack.c.b16 %v525, %v521
        %v594 = vpack.c.b16 %v526, %v522
        %v595 = vpack.c.b16 %v527, %v523
        %v596 = vpack.c.b16 %v532, %v528
        %v597 = vpack.c.b16 %v533, %v529
        %v598 = vpack.c.b16 %v534, %v530
        %v599 = vpack.c.b16 %v535, %v531
        %664 = vmatprep.subr.bf16.mxu0 %v537
        %665 = vmatpush1.bf16.msra.mxu0 %v536
        %666 = vmatprep.subr.bf16.mxu0 %v541
        %667 = vmatpush1.bf16.msra.mxu0 %v540
        %668 = vmatprep.subr.bf16.mxu0 %v545
        %669 = vmatpush1.bf16.msra.mxu0 %v544
        %670 = vmatprep.subr.bf16.mxu0 %v549
        %671 = vmatpush1.bf16.msra.mxu0 %v548
        %672 = vmatprep.subr.bf16.mxu0 %v553
        %673 = vmatpush1.bf16.msra.mxu0 %v552
        %674 = vmatprep.subr.bf16.mxu0 %v557
        %675 = vmatpush1.bf16.msra.mxu0 %v556
        %676 = vmatprep.subr.bf16.mxu0 %v561
        %677 = vmatpush1.bf16.msra.mxu0 %v560
        %678 = vmatprep.subr.bf16.mxu0 %v565
        %679 = vmatpush1.bf16.msra.mxu0 %v564
        %680 = vmatprep.subr.bf16.mxu0 %v569
        %681 = vmatpush1.bf16.msra.mxu0 %v568
        %682 = vmatprep.subr.bf16.mxu0 %v573
        %683 = vmatpush1.bf16.msra.mxu0 %v572
        %684 = vmatprep.subr.bf16.mxu0 %v577
        %685 = vmatpush1.bf16.msra.mxu0 %v576
        %686 = vmatprep.subr.bf16.mxu0 %v581
        %687 = vmatpush1.bf16.msra.mxu0 %v580
        %688 = vmatprep.subr.bf16.mxu0 %v585
        %689 = vmatpush1.bf16.msra.mxu0 %v584
        %690 = vmatprep.subr.bf16.mxu0 %v589
        %691 = vmatpush1.bf16.msra.mxu0 %v588
        %692 = vmatprep.subr.bf16.mxu0 %v593
        %693 = vmatpush1.bf16.msra.mxu0 %v592
        %694 = vmatprep.subr.bf16.mxu0 %v597
        %695 = vmatpush1.bf16.msra.mxu0 %v596
        %696 = vmatprep.mubr.bf16.mxu0 %v341
        %697 = vmatmul.mubr.bf16.gmra.mrb[0].mxu0 %v340
        %v698 = vpop.f32.mrb[0].mxu0
        %v699 = vadd.f32 0.0, %v698
        %v700 = vpop.f32.mrb[0].mxu0
        %v701 = vadd.f32 0.0, %v700
        %v702 = vpop.f32.mrb[0].mxu0
        %v703 = vadd.f32 0.0, %v702
        %v704 = vpop.f32.mrb[0].mxu0
        %v705 = vadd.f32 0.0, %v704
        %706 = vdwg.mxu0
        %707 = vmatprep.subr.bf16.mxu0 %v539
        %708 = vmatpush1.bf16.msra.mxu0 %v538
        %709 = vmatprep.subr.bf16.mxu0 %v543
        %710 = vmatpush1.bf16.msra.mxu0 %v542
        %711 = vmatprep.subr.bf16.mxu0 %v547
        %712 = vmatpush1.bf16.msra.mxu0 %v546
        %713 = vmatprep.subr.bf16.mxu0 %v551
        %714 = vmatpush1.bf16.msra.mxu0 %v550
        %715 = vmatprep.subr.bf16.mxu0 %v555
        %716 = vmatpush1.bf16.msra.mxu0 %v554
        %717 = vmatprep.subr.bf16.mxu0 %v559
        %718 = vmatpush1.bf16.msra.mxu0 %v558
        %719 = vmatprep.subr.bf16.mxu0 %v563
        %720 = vmatpush1.bf16.msra.mxu0 %v562
        %721 = vmatprep.subr.bf16.mxu0 %v567
        %722 = vmatpush1.bf16.msra.mxu0 %v566
        %723 = vmatprep.subr.bf16.mxu0 %v571
        %724 = vmatpush1.bf16.msra.mxu0 %v570
        %725 = vmatprep.subr.bf16.mxu0 %v575
        %726 = vmatpush1.bf16.msra.mxu0 %v574
        %727 = vmatprep.subr.bf16.mxu0 %v579
        %728 = vmatpush1.bf16.msra.mxu0 %v578
        %729 = vmatprep.subr.bf16.mxu0 %v583
        %730 = vmatpush1.bf16.msra.mxu0 %v582
        %731 = vmatprep.subr.bf16.mxu0 %v587
        %732 = vmatpush1.bf16.msra.mxu0 %v586
        %733 = vmatprep.subr.bf16.mxu0 %v591
        %734 = vmatpush1.bf16.msra.mxu0 %v590
        %735 = vmatprep.subr.bf16.mxu0 %v595
        %736 = vmatpush1.bf16.msra.mxu0 %v594
        %737 = vmatprep.subr.bf16.mxu0 %v599
        %738 = vmatpush1.bf16.msra.mxu0 %v598
        %739 = vmatprep.mubr.bf16.mxu0 %v341
        %740 = vmatmul.mubr.bf16.gmra.mrb[0].mxu0 %v340
        %v741 = vpop.f32.mrb[0].mxu0
        %v742 = vadd.f32 0.0, %v741
        %v743 = vpop.f32.mrb[0].mxu0
        %v744 = vadd.f32 0.0, %v743
        %v745 = vpop.f32.mrb[0].mxu0
        %v746 = vadd.f32 0.0, %v745
        %v747 = vpop.f32.mrb[0].mxu0
        %v748 = vadd.f32 0.0, %v747
        %749 = vdwg.mxu0
        %s750 = scalar_lea.vmem %s224, 512 [#allocation6]
        %v751 = vld [vmem:[%s750] sm:$0xff]
        %v752 = vld [vmem:[%s750 + $0x8] sm:$0xff]
        %v753 = vld [vmem:[%s750 + $0x10] sm:$0xff]
        %v754 = vld [vmem:[%s750 + $0x18] sm:$0xff]
        %v755 = vld [vmem:[%s750 + $0x20] sm:$0xff]
        %v756 = vld [vmem:[%s750 + $0x28] sm:$0xff]
        %v757 = vld [vmem:[%s750 + $0x30] sm:$0xff]
        %v758 = vld [vmem:[%s750 + $0x38] sm:$0xff]
        %v759 = vld [vmem:[%s750 + $0x40] sm:$0xff]
        %v760 = vld [vmem:[%s750 + $0x48] sm:$0xff]
        %v761 = vld [vmem:[%s750 + $0x50] sm:$0xff]
        %v762 = vld [vmem:[%s750 + $0x58] sm:$0xff]
        %v763 = vld [vmem:[%s750 + $0x60] sm:$0xff]
        %v764 = vld [vmem:[%s750 + $0x68] sm:$0xff]
        %v765 = vld [vmem:[%s750 + $0x70] sm:$0xff]
        %v766 = vld [vmem:[%s750 + $0x78] sm:$0xff]
        %v767 = vld [vmem:[%s750 + $0x80] sm:$0xff]
        %v768 = vld [vmem:[%s750 + $0x88] sm:$0xff]
        %v769 = vld [vmem:[%s750 + $0x90] sm:$0xff]
        %v770 = vld [vmem:[%s750 + $0x98] sm:$0xff]
        %v771 = vld [vmem:[%s750 + $0xa0] sm:$0xff]
        %v772 = vld [vmem:[%s750 + $0xa8] sm:$0xff]
        %v773 = vld [vmem:[%s750 + $0xb0] sm:$0xff]
        %v774 = vld [vmem:[%s750 + $0xb8] sm:$0xff]
        %v775 = vld [vmem:[%s750 + $0xc0] sm:$0xff]
        %v776 = vld [vmem:[%s750 + $0xc8] sm:$0xff]
        %v777 = vld [vmem:[%s750 + $0xd0] sm:$0xff]
        %v778 = vld [vmem:[%s750 + $0xd8] sm:$0xff]
        %v779 = vld [vmem:[%s750 + $0xe0] sm:$0xff]
        %v780 = vld [vmem:[%s750 + $0xe8] sm:$0xff]
        %v781 = vld [vmem:[%s750 + $0xf0] sm:$0xff]
        %v782 = vld [vmem:[%s750 + $0xf8] sm:$0xff]
        %v783 = vld [vmem:[%s750 + $0x100] sm:$0xff]
        %v784 = vld [vmem:[%s750 + $0x108] sm:$0xff]
        %v785 = vld [vmem:[%s750 + $0x110] sm:$0xff]
        %v786 = vld [vmem:[%s750 + $0x118] sm:$0xff]
        %v787 = vld [vmem:[%s750 + $0x120] sm:$0xff]
        %v788 = vld [vmem:[%s750 + $0x128] sm:$0xff]
        %v789 = vld [vmem:[%s750 + $0x130] sm:$0xff]
        %v790 = vld [vmem:[%s750 + $0x138] sm:$0xff]
        %v791 = vld [vmem:[%s750 + $0x140] sm:$0xff]
        %v792 = vld [vmem:[%s750 + $0x148] sm:$0xff]
        %v793 = vld [vmem:[%s750 + $0x150] sm:$0xff]
        %v794 = vld [vmem:[%s750 + $0x158] sm:$0xff]
        %v795 = vld [vmem:[%s750 + $0x160] sm:$0xff]
        %v796 = vld [vmem:[%s750 + $0x168] sm:$0xff]
        %v797 = vld [vmem:[%s750 + $0x170] sm:$0xff]
        %v798 = vld [vmem:[%s750 + $0x178] sm:$0xff]
        %v799 = vld [vmem:[%s750 + $0x180] sm:$0xff]
        %v800 = vld [vmem:[%s750 + $0x188] sm:$0xff]
        %v801 = vld [vmem:[%s750 + $0x190] sm:$0xff]
        %v802 = vld [vmem:[%s750 + $0x198] sm:$0xff]
        %v803 = vld [vmem:[%s750 + $0x1a0] sm:$0xff]
        %v804 = vld [vmem:[%s750 + $0x1a8] sm:$0xff]
        %v805 = vld [vmem:[%s750 + $0x1b0] sm:$0xff]
        %v806 = vld [vmem:[%s750 + $0x1b8] sm:$0xff]
        %v807 = vld [vmem:[%s750 + $0x1c0] sm:$0xff]
        %v808 = vld [vmem:[%s750 + $0x1c8] sm:$0xff]
        %v809 = vld [vmem:[%s750 + $0x1d0] sm:$0xff]
        %v810 = vld [vmem:[%s750 + $0x1d8] sm:$0xff]
        %v811 = vld [vmem:[%s750 + $0x1e0] sm:$0xff]
        %v812 = vld [vmem:[%s750 + $0x1e8] sm:$0xff]
        %v813 = vld [vmem:[%s750 + $0x1f0] sm:$0xff]
        %v814 = vld [vmem:[%s750 + $0x1f8] sm:$0xff]
        %v879 = vunpack.c.l.b16 %v751
        %v880 = vunpack.c.h.b16 %v751
        %v881 = vunpack.c.l.b16 %v752
        %v882 = vunpack.c.h.b16 %v752
        %v883 = vunpack.c.l.b16 %v753
        %v884 = vunpack.c.h.b16 %v753
        %v885 = vunpack.c.l.b16 %v754
        %v886 = vunpack.c.h.b16 %v754
        %v887 = vunpack.c.l.b16 %v755
        %v888 = vunpack.c.h.b16 %v755
        %v889 = vunpack.c.l.b16 %v756
        %v890 = vunpack.c.h.b16 %v756
        %v891 = vunpack.c.l.b16 %v757
        %v892 = vunpack.c.h.b16 %v757
        %v893 = vunpack.c.l.b16 %v758
        %v894 = vunpack.c.h.b16 %v758
        %v895 = vunpack.c.l.b16 %v759
        %v896 = vunpack.c.h.b16 %v759
        %v897 = vunpack.c.l.b16 %v760
        %v898 = vunpack.c.h.b16 %v760
        %v899 = vunpack.c.l.b16 %v761
        %v900 = vunpack.c.h.b16 %v761
        %v901 = vunpack.c.l.b16 %v762
        %v902 = vunpack.c.h.b16 %v762
        %v903 = vunpack.c.l.b16 %v763
        %v904 = vunpack.c.h.b16 %v763
        %v905 = vunpack.c.l.b16 %v764
        %v906 = vunpack.c.h.b16 %v764
        %v907 = vunpack.c.l.b16 %v765
        %v908 = vunpack.c.h.b16 %v765
        %v909 = vunpack.c.l.b16 %v766
        %v910 = vunpack.c.h.b16 %v766
        %v911 = vunpack.c.l.b16 %v767
        %v912 = vunpack.c.h.b16 %v767
        %v913 = vunpack.c.l.b16 %v768
        %v914 = vunpack.c.h.b16 %v768
        %v915 = vunpack.c.l.b16 %v769
        %v916 = vunpack.c.h.b16 %v769
        %v917 = vunpack.c.l.b16 %v770
        %v918 = vunpack.c.h.b16 %v770
        %v919 = vunpack.c.l.b16 %v771
        %v920 = vunpack.c.h.b16 %v771
        %v921 = vunpack.c.l.b16 %v772
        %v922 = vunpack.c.h.b16 %v772
        %v923 = vunpack.c.l.b16 %v773
        %v924 = vunpack.c.h.b16 %v773
        %v925 = vunpack.c.l.b16 %v774
        %v926 = vunpack.c.h.b16 %v774
        %v927 = vunpack.c.l.b16 %v775
        %v928 = vunpack.c.h.b16 %v775
        %v929 = vunpack.c.l.b16 %v776
        %v930 = vunpack.c.h.b16 %v776
        %v931 = vunpack.c.l.b16 %v777
        %v932 = vunpack.c.h.b16 %v777
        %v933 = vunpack.c.l.b16 %v778
        %v934 = vunpack.c.h.b16 %v778
        %v935 = vunpack.c.l.b16 %v779
        %v936 = vunpack.c.h.b16 %v779
        %v937 = vunpack.c.l.b16 %v780
        %v938 = vunpack.c.h.b16 %v780
        %v939 = vunpack.c.l.b16 %v781
        %v940 = vunpack.c.h.b16 %v781
        %v941 = vunpack.c.l.b16 %v782
        %v942 = vunpack.c.h.b16 %v782
        %v943 = vunpack.c.l.b16 %v783
        %v944 = vunpack.c.h.b16 %v783
        %v945 = vunpack.c.l.b16 %v784
        %v946 = vunpack.c.h.b16 %v784
        %v947 = vunpack.c.l.b16 %v785
        %v948 = vunpack.c.h.b16 %v785
        %v949 = vunpack.c.l.b16 %v786
        %v950 = vunpack.c.h.b16 %v786
        %v951 = vunpack.c.l.b16 %v787
        %v952 = vunpack.c.h.b16 %v787
        %v953 = vunpack.c.l.b16 %v788
        %v954 = vunpack.c.h.b16 %v788
        %v955 = vunpack.c.l.b16 %v789
        %v956 = vunpack.c.h.b16 %v789
        %v957 = vunpack.c.l.b16 %v790
        %v958 = vunpack.c.h.b16 %v790
        %v959 = vunpack.c.l.b16 %v791
        %v960 = vunpack.c.h.b16 %v791
        %v961 = vunpack.c.l.b16 %v792
        %v962 = vunpack.c.h.b16 %v792
        %v963 = vunpack.c.l.b16 %v793
        %v964 = vunpack.c.h.b16 %v793
        %v965 = vunpack.c.l.b16 %v794
        %v966 = vunpack.c.h.b16 %v794
        %v967 = vunpack.c.l.b16 %v795
        %v968 = vunpack.c.h.b16 %v795
        %v969 = vunpack.c.l.b16 %v796
        %v970 = vunpack.c.h.b16 %v796
        %v971 = vunpack.c.l.b16 %v797
        %v972 = vunpack.c.h.b16 %v797
        %v973 = vunpack.c.l.b16 %v798
        %v974 = vunpack.c.h.b16 %v798
        %v975 = vunpack.c.l.b16 %v799
        %v976 = vunpack.c.h.b16 %v799
        %v977 = vunpack.c.l.b16 %v800
        %v978 = vunpack.c.h.b16 %v800
        %v979 = vunpack.c.l.b16 %v801
        %v980 = vunpack.c.h.b16 %v801
        %v981 = vunpack.c.l.b16 %v802
        %v982 = vunpack.c.h.b16 %v802
        %v983 = vunpack.c.l.b16 %v803
        %v984 = vunpack.c.h.b16 %v803
        %v985 = vunpack.c.l.b16 %v804
        %v986 = vunpack.c.h.b16 %v804
        %v987 = vunpack.c.l.b16 %v805
        %v988 = vunpack.c.h.b16 %v805
        %v989 = vunpack.c.l.b16 %v806
        %v990 = vunpack.c.h.b16 %v806
        %v991 = vunpack.c.l.b16 %v807
        %v992 = vunpack.c.h.b16 %v807
        %v993 = vunpack.c.l.b16 %v808
        %v994 = vunpack.c.h.b16 %v808
        %v995 = vunpack.c.l.b16 %v809
        %v996 = vunpack.c.h.b16 %v809
        %v997 = vunpack.c.l.b16 %v810
        %v998 = vunpack.c.h.b16 %v810
        %v999 = vunpack.c.l.b16 %v811
        %v1000 = vunpack.c.h.b16 %v811
        %v1001 = vunpack.c.l.b16 %v812
        %v1002 = vunpack.c.h.b16 %v812
        %v1003 = vunpack.c.l.b16 %v813
        %v1004 = vunpack.c.h.b16 %v813
        %v1005 = vunpack.c.l.b16 %v814
        %v1006 = vunpack.c.h.b16 %v814
        %v1007 = vpack.c.b16 %v883, %v879
        %v1008 = vpack.c.b16 %v884, %v880
        %v1009 = vpack.c.b16 %v885, %v881
        %v1010 = vpack.c.b16 %v886, %v882
        %v1011 = vpack.c.b16 %v891, %v887
        %v1012 = vpack.c.b16 %v892, %v888
        %v1013 = vpack.c.b16 %v893, %v889
        %v1014 = vpack.c.b16 %v894, %v890
        %v1015 = vpack.c.b16 %v899, %v895
        %v1016 = vpack.c.b16 %v900, %v896
        %v1017 = vpack.c.b16 %v901, %v897
        %v1018 = vpack.c.b16 %v902, %v898
        %v1019 = vpack.c.b16 %v907, %v903
        %v1020 = vpack.c.b16 %v908, %v904
        %v1021 = vpack.c.b16 %v909, %v905
        %v1022 = vpack.c.b16 %v910, %v906
        %v1023 = vpack.c.b16 %v915, %v911
        %v1024 = vpack.c.b16 %v916, %v912
        %v1025 = vpack.c.b16 %v917, %v913
        %v1026 = vpack.c.b16 %v918, %v914
        %v1027 = vpack.c.b16 %v923, %v919
        %v1028 = vpack.c.b16 %v924, %v920
        %v1029 = vpack.c.b16 %v925, %v921
        %v1030 = vpack.c.b16 %v926, %v922
        %v1031 = vpack.c.b16 %v931, %v927
        %v1032 = vpack.c.b16 %v932, %v928
        %v1033 = vpack.c.b16 %v933, %v929
        %v1034 = vpack.c.b16 %v934, %v930
        %v1035 = vpack.c.b16 %v939, %v935
        %v1036 = vpack.c.b16 %v940, %v936
        %v1037 = vpack.c.b16 %v941, %v937
        %v1038 = vpack.c.b16 %v942, %v938
        %v1039 = vpack.c.b16 %v947, %v943
        %v1040 = vpack.c.b16 %v948, %v944
        %v1041 = vpack.c.b16 %v949, %v945
        %v1042 = vpack.c.b16 %v950, %v946
        %v1043 = vpack.c.b16 %v955, %v951
        %v1044 = vpack.c.b16 %v956, %v952
        %v1045 = vpack.c.b16 %v957, %v953
        %v1046 = vpack.c.b16 %v958, %v954
        %v1047 = vpack.c.b16 %v963, %v959
        %v1048 = vpack.c.b16 %v964, %v960
        %v1049 = vpack.c.b16 %v965, %v961
        %v1050 = vpack.c.b16 %v966, %v962
        %v1051 = vpack.c.b16 %v971, %v967
        %v1052 = vpack.c.b16 %v972, %v968
        %v1053 = vpack.c.b16 %v973, %v969
        %v1054 = vpack.c.b16 %v974, %v970
        %v1055 = vpack.c.b16 %v979, %v975
        %v1056 = vpack.c.b16 %v980, %v976
        %v1057 = vpack.c.b16 %v981, %v977
        %v1058 = vpack.c.b16 %v982, %v978
        %v1059 = vpack.c.b16 %v987, %v983
        %v1060 = vpack.c.b16 %v988, %v984
        %v1061 = vpack.c.b16 %v989, %v985
        %v1062 = vpack.c.b16 %v990, %v986
        %v1063 = vpack.c.b16 %v995, %v991
        %v1064 = vpack.c.b16 %v996, %v992
        %v1065 = vpack.c.b16 %v997, %v993
        %v1066 = vpack.c.b16 %v998, %v994
        %v1067 = vpack.c.b16 %v1003, %v999
        %v1068 = vpack.c.b16 %v1004, %v1000
        %v1069 = vpack.c.b16 %v1005, %v1001
        %v1070 = vpack.c.b16 %v1006, %v1002
        %1135 = vmatprep.subr.bf16.mxu0 %v1008
        %1136 = vmatpush1.bf16.msra.mxu0 %v1007
        %1137 = vmatprep.subr.bf16.mxu0 %v1012
        %1138 = vmatpush1.bf16.msra.mxu0 %v1011
        %1139 = vmatprep.subr.bf16.mxu0 %v1016
        %1140 = vmatpush1.bf16.msra.mxu0 %v1015
        %1141 = vmatprep.subr.bf16.mxu0 %v1020
        %1142 = vmatpush1.bf16.msra.mxu0 %v1019
        %1143 = vmatprep.subr.bf16.mxu0 %v1024
        %1144 = vmatpush1.bf16.msra.mxu0 %v1023
        %1145 = vmatprep.subr.bf16.mxu0 %v1028
        %1146 = vmatpush1.bf16.msra.mxu0 %v1027
        %1147 = vmatprep.subr.bf16.mxu0 %v1032
        %1148 = vmatpush1.bf16.msra.mxu0 %v1031
        %1149 = vmatprep.subr.bf16.mxu0 %v1036
        %1150 = vmatpush1.bf16.msra.mxu0 %v1035
        %1151 = vmatprep.subr.bf16.mxu0 %v1040
        %1152 = vmatpush1.bf16.msra.mxu0 %v1039
        %1153 = vmatprep.subr.bf16.mxu0 %v1044
        %1154 = vmatpush1.bf16.msra.mxu0 %v1043
        %1155 = vmatprep.subr.bf16.mxu0 %v1048
        %1156 = vmatpush1.bf16.msra.mxu0 %v1047
        %1157 = vmatprep.subr.bf16.mxu0 %v1052
        %1158 = vmatpush1.bf16.msra.mxu0 %v1051
        %1159 = vmatprep.subr.bf16.mxu0 %v1056
        %1160 = vmatpush1.bf16.msra.mxu0 %v1055
        %1161 = vmatprep.subr.bf16.mxu0 %v1060
        %1162 = vmatpush1.bf16.msra.mxu0 %v1059
        %1163 = vmatprep.subr.bf16.mxu0 %v1064
        %1164 = vmatpush1.bf16.msra.mxu0 %v1063
        %1165 = vmatprep.subr.bf16.mxu0 %v1068
        %1166 = vmatpush1.bf16.msra.mxu0 %v1067
        %1167 = vmatprep.mubr.bf16.mxu0 %v341
        %1168 = vmatmul.mubr.bf16.gmra.mrb[0].mxu0 %v340
        %v1169 = vpop.f32.mrb[0].mxu0
        %v1170 = vadd.f32 0.0, %v1169
        %v1171 = vpop.f32.mrb[0].mxu0
        %v1172 = vadd.f32 0.0, %v1171
        %v1173 = vpop.f32.mrb[0].mxu0
        %v1174 = vadd.f32 0.0, %v1173
        %v1175 = vpop.f32.mrb[0].mxu0
        %v1176 = vadd.f32 0.0, %v1175
        %1177 = vdwg.mxu0
        %1178 = vmatprep.subr.bf16.mxu0 %v1010
        %1179 = vmatpush1.bf16.msra.mxu0 %v1009
        %1180 = vmatprep.subr.bf16.mxu0 %v1014
        %1181 = vmatpush1.bf16.msra.mxu0 %v1013
        %1182 = vmatprep.subr.bf16.mxu0 %v1018
        %1183 = vmatpush1.bf16.msra.mxu0 %v1017
        %1184 = vmatprep.subr.bf16.mxu0 %v1022
        %1185 = vmatpush1.bf16.msra.mxu0 %v1021
        %1186 = vmatprep.subr.bf16.mxu0 %v1026
        %1187 = vmatpush1.bf16.msra.mxu0 %v1025
        %1188 = vmatprep.subr.bf16.mxu0 %v1030
        %1189 = vmatpush1.bf16.msra.mxu0 %v1029
        %1190 = vmatprep.subr.bf16.mxu0 %v1034
        %1191 = vmatpush1.bf16.msra.mxu0 %v1033
        %1192 = vmatprep.subr.bf16.mxu0 %v1038
        %1193 = vmatpush1.bf16.msra.mxu0 %v1037
        %1194 = vmatprep.subr.bf16.mxu0 %v1042
        %1195 = vmatpush1.bf16.msra.mxu0 %v1041
        %1196 = vmatprep.subr.bf16.mxu0 %v1046
        %1197 = vmatpush1.bf16.msra.mxu0 %v1045
        %1198 = vmatprep.subr.bf16.mxu0 %v1050
        %1199 = vmatpush1.bf16.msra.mxu0 %v1049
        %1200 = vmatprep.subr.bf16.mxu0 %v1054
        %1201 = vmatpush1.bf16.msra.mxu0 %v1053
        %1202 = vmatprep.subr.bf16.mxu0 %v1058
        %1203 = vmatpush1.bf16.msra.mxu0 %v1057
        %1204 = vmatprep.subr.bf16.mxu0 %v1062
        %1205 = vmatpush1.bf16.msra.mxu0 %v1061
        %1206 = vmatprep.subr.bf16.mxu0 %v1066
        %1207 = vmatpush1.bf16.msra.mxu0 %v1065
        %1208 = vmatprep.subr.bf16.mxu0 %v1070
        %1209 = vmatpush1.bf16.msra.mxu0 %v1069
        %1210 = vmatprep.mubr.bf16.mxu0 %v341
        %1211 = vmatmul.mubr.bf16.gmra.mrb[0].mxu0 %v340
        %v1212 = vpop.f32.mrb[0].mxu0
        %v1213 = vadd.f32 0.0, %v1212
        %v1214 = vpop.f32.mrb[0].mxu0
        %v1215 = vadd.f32 0.0, %v1214
        %v1216 = vpop.f32.mrb[0].mxu0
        %v1217 = vadd.f32 0.0, %v1216
        %v1218 = vpop.f32.mrb[0].mxu0
        %v1219 = vadd.f32 0.0, %v1218
        %1220 = vdwg.mxu0
        %v1221 = vxor.u32 %v699, 2147483648
        %v1222 = vxor.u32 %v701, 2147483648
        %v1223 = vxor.u32 %v742, 2147483648
        %v1224 = vxor.u32 %v744, 2147483648
        %v1225 = vxor.u32 %v703, 2147483648
        %v1226 = vxor.u32 %v705, 2147483648
        %v1227 = vxor.u32 %v746, 2147483648
        %v1228 = vxor.u32 %v748, 2147483648
        %v1229 = vmul.f32 %v1221, 1.442695
        %v1230 = vpow.pop %v1229
        %v1231 = vmul.f32 %v1222, 1.442695
        %v1232 = vpow.pop %v1231
        %v1233 = vmul.f32 %v1223, 1.442695
        %v1234 = vpow.pop %v1233
        %v1235 = vmul.f32 %v1224, 1.442695
        %v1236 = vpow.pop %v1235
        %v1237 = vmul.f32 %v1225, 1.442695
        %v1238 = vpow.pop %v1237
        %v1239 = vmul.f32 %v1226, 1.442695
        %v1240 = vpow.pop %v1239
        %v1241 = vmul.f32 %v1227, 1.442695
        %v1242 = vpow.pop %v1241
        %v1243 = vmul.f32 %v1228, 1.442695
        %v1244 = vpow.pop %v1243
        %v1245 = vadd.f32 %v1230, 1.0
        %v1246 = vadd.f32 %v1232, 1.0
        %v1247 = vadd.f32 %v1234, 1.0
        %v1248 = vadd.f32 %v1236, 1.0
        %v1249 = vadd.f32 %v1238, 1.0
        %v1250 = vadd.f32 %v1240, 1.0
        %v1251 = vadd.f32 %v1242, 1.0
        %v1252 = vadd.f32 %v1244, 1.0
        %v1253 = vrcp.pop %v1245
        %v1254 = vmul.f32 1.0, %v1253
        %v1255 = vrcp.pop %v1246
        %v1256 = vmul.f32 1.0, %v1255
        %v1257 = vrcp.pop %v1247
        %v1258 = vmul.f32 1.0, %v1257
        %v1259 = vrcp.pop %v1248
        %v1260 = vmul.f32 1.0, %v1259
        %v1261 = vrcp.pop %v1249
        %v1262 = vmul.f32 1.0, %v1261
        %v1263 = vrcp.pop %v1250
        %v1264 = vmul.f32 1.0, %v1263
        %v1265 = vrcp.pop %v1251
        %v1266 = vmul.f32 1.0, %v1265
        %v1267 = vrcp.pop %v1252
        %v1268 = vmul.f32 1.0, %v1267
        %v1269 = vmul.f32 %v699, %v1254
        %v1270 = vmul.f32 %v701, %v1256
        %v1271 = vmul.f32 %v742, %v1258
        %v1272 = vmul.f32 %v744, %v1260
        %v1273 = vmul.f32 %v703, %v1262
        %v1274 = vmul.f32 %v705, %v1264
        %v1275 = vmul.f32 %v746, %v1266
        %v1276 = vmul.f32 %v748, %v1268
        %v1277 = vmul.f32 %v1269, %v1170
        %v1278 = vmul.f32 %v1270, %v1172
        %v1279 = vmul.f32 %v1271, %v1213
        %v1280 = vmul.f32 %v1272, %v1215
        %v1281 = vmul.f32 %v1273, %v1174
        %v1282 = vmul.f32 %v1274, %v1176
        %v1283 = vmul.f32 %v1275, %v1217
        %v1284 = vmul.f32 %v1276, %v1219
        %v1285 = vpack.c.bf16 %v1281, %v1277
        %v1286 = vpack.c.bf16 %v1282, %v1278
        %v1287 = vpack.c.bf16 %v1283, %v1279
        %v1288 = vpack.c.bf16 %v1284, %v1280
        %v1289 = vld [vmem:[#allocation2] sm:$0xff]
        %v1290 = vld [vmem:[#allocation2 + $0x8] sm:$0xff]
        %v1291 = vld [vmem:[#allocation2 + $0x10] sm:$0xff]
        %v1292 = vld [vmem:[#allocation2 + $0x18] sm:$0xff]
        %v1293 = vld [vmem:[%s233] sm:$0xff]
        %v1294 = vld [vmem:[%s233 + $0x8] sm:$0xff]
        %v1295 = vld [vmem:[%s233 + $0x10] sm:$0xff]
        %v1296 = vld [vmem:[%s233 + $0x18] sm:$0xff]
        %v1297 = vld [vmem:[%s233 + $0x20] sm:$0xff]
        %v1298 = vld [vmem:[%s233 + $0x28] sm:$0xff]
        %v1299 = vld [vmem:[%s233 + $0x30] sm:$0xff]
        %v1300 = vld [vmem:[%s233 + $0x38] sm:$0xff]
        %v1301 = vld [vmem:[%s233 + $0x40] sm:$0xff]
        %v1302 = vld [vmem:[%s233 + $0x48] sm:$0xff]
        %v1303 = vld [vmem:[%s233 + $0x50] sm:$0xff]
        %v1304 = vld [vmem:[%s233 + $0x58] sm:$0xff]
        %v1305 = vld [vmem:[%s233 + $0x60] sm:$0xff]
        %v1306 = vld [vmem:[%s233 + $0x68] sm:$0xff]
        %v1307 = vld [vmem:[%s233 + $0x70] sm:$0xff]
        %v1308 = vld [vmem:[%s233 + $0x78] sm:$0xff]
        %v1309 = vld [vmem:[%s233 + $0x80] sm:$0xff]
        %v1310 = vld [vmem:[%s233 + $0x88] sm:$0xff]
        %v1311 = vld [vmem:[%s233 + $0x90] sm:$0xff]
        %v1312 = vld [vmem:[%s233 + $0x98] sm:$0xff]
        %v1313 = vld [vmem:[%s233 + $0xa0] sm:$0xff]
        %v1314 = vld [vmem:[%s233 + $0xa8] sm:$0xff]
        %v1315 = vld [vmem:[%s233 + $0xb0] sm:$0xff]
        %v1316 = vld [vmem:[%s233 + $0xb8] sm:$0xff]
        %v1317 = vld [vmem:[%s233 + $0xc0] sm:$0xff]
        %v1318 = vld [vmem:[%s233 + $0xc8] sm:$0xff]
        %v1319 = vld [vmem:[%s233 + $0xd0] sm:$0xff]
        %v1320 = vld [vmem:[%s233 + $0xd8] sm:$0xff]
        %v1321 = vld [vmem:[%s233 + $0xe0] sm:$0xff]
        %v1322 = vld [vmem:[%s233 + $0xe8] sm:$0xff]
        %v1323 = vld [vmem:[%s233 + $0xf0] sm:$0xff]
        %v1324 = vld [vmem:[%s233 + $0xf8] sm:$0xff]
        %v1325 = vld [vmem:[%s233 + $0x100] sm:$0xff]
        %v1326 = vld [vmem:[%s233 + $0x108] sm:$0xff]
        %v1327 = vld [vmem:[%s233 + $0x110] sm:$0xff]
        %v1328 = vld [vmem:[%s233 + $0x118] sm:$0xff]
        %v1329 = vld [vmem:[%s233 + $0x120] sm:$0xff]
        %v1330 = vld [vmem:[%s233 + $0x128] sm:$0xff]
        %v1331 = vld [vmem:[%s233 + $0x130] sm:$0xff]
        %v1332 = vld [vmem:[%s233 + $0x138] sm:$0xff]
        %v1333 = vld [vmem:[%s233 + $0x140] sm:$0xff]
        %v1334 = vld [vmem:[%s233 + $0x148] sm:$0xff]
        %v1335 = vld [vmem:[%s233 + $0x150] sm:$0xff]
        %v1336 = vld [vmem:[%s233 + $0x158] sm:$0xff]
        %v1337 = vld [vmem:[%s233 + $0x160] sm:$0xff]
        %v1338 = vld [vmem:[%s233 + $0x168] sm:$0xff]
        %v1339 = vld [vmem:[%s233 + $0x170] sm:$0xff]
        %v1340 = vld [vmem:[%s233 + $0x178] sm:$0xff]
        %v1341 = vld [vmem:[%s233 + $0x180] sm:$0xff]
        %v1342 = vld [vmem:[%s233 + $0x188] sm:$0xff]
        %v1343 = vld [vmem:[%s233 + $0x190] sm:$0xff]
        %v1344 = vld [vmem:[%s233 + $0x198] sm:$0xff]
        %v1345 = vld [vmem:[%s233 + $0x1a0] sm:$0xff]
        %v1346 = vld [vmem:[%s233 + $0x1a8] sm:$0xff]
        %v1347 = vld [vmem:[%s233 + $0x1b0] sm:$0xff]
        %v1348 = vld [vmem:[%s233 + $0x1b8] sm:$0xff]
        %v1349 = vld [vmem:[%s233 + $0x1c0] sm:$0xff]
        %v1350 = vld [vmem:[%s233 + $0x1c8] sm:$0xff]
        %v1351 = vld [vmem:[%s233 + $0x1d0] sm:$0xff]
        %v1352 = vld [vmem:[%s233 + $0x1d8] sm:$0xff]
        %v1353 = vld [vmem:[%s233 + $0x1e0] sm:$0xff]
        %v1354 = vld [vmem:[%s233 + $0x1e8] sm:$0xff]
        %v1355 = vld [vmem:[%s233 + $0x1f0] sm:$0xff]
        %v1356 = vld [vmem:[%s233 + $0x1f8] sm:$0xff]
        %v1421 = vunpack.c.l.b16 %v1293
        %v1422 = vunpack.c.h.b16 %v1293
        %v1423 = vunpack.c.l.b16 %v1294
        %v1424 = vunpack.c.h.b16 %v1294
        %v1425 = vunpack.c.l.b16 %v1295
        %v1426 = vunpack.c.h.b16 %v1295
        %v1427 = vunpack.c.l.b16 %v1296
        %v1428 = vunpack.c.h.b16 %v1296
        %v1429 = vunpack.c.l.b16 %v1297
        %v1430 = vunpack.c.h.b16 %v1297
        %v1431 = vunpack.c.l.b16 %v1298
        %v1432 = vunpack.c.h.b16 %v1298
        %v1433 = vunpack.c.l.b16 %v1299
        %v1434 = vunpack.c.h.b16 %v1299
        %v1435 = vunpack.c.l.b16 %v1300
        %v1436 = vunpack.c.h.b16 %v1300
        %v1437 = vunpack.c.l.b16 %v1301
        %v1438 = vunpack.c.h.b16 %v1301
        %v1439 = vunpack.c.l.b16 %v1302
        %v1440 = vunpack.c.h.b16 %v1302
        %v1441 = vunpack.c.l.b16 %v1303
        %v1442 = vunpack.c.h.b16 %v1303
        %v1443 = vunpack.c.l.b16 %v1304
        %v1444 = vunpack.c.h.b16 %v1304
        %v1445 = vunpack.c.l.b16 %v1305
        %v1446 = vunpack.c.h.b16 %v1305
        %v1447 = vunpack.c.l.b16 %v1306
        %v1448 = vunpack.c.h.b16 %v1306
        %v1449 = vunpack.c.l.b16 %v1307
        %v1450 = vunpack.c.h.b16 %v1307
        %v1451 = vunpack.c.l.b16 %v1308
        %v1452 = vunpack.c.h.b16 %v1308
        %v1453 = vunpack.c.l.b16 %v1309
        %v1454 = vunpack.c.h.b16 %v1309
        %v1455 = vunpack.c.l.b16 %v1310
        %v1456 = vunpack.c.h.b16 %v1310
        %v1457 = vunpack.c.l.b16 %v1311
        %v1458 = vunpack.c.h.b16 %v1311
        %v1459 = vunpack.c.l.b16 %v1312
        %v1460 = vunpack.c.h.b16 %v1312
        %v1461 = vunpack.c.l.b16 %v1313
        %v1462 = vunpack.c.h.b16 %v1313
        %v1463 = vunpack.c.l.b16 %v1314
        %v1464 = vunpack.c.h.b16 %v1314
        %v1465 = vunpack.c.l.b16 %v1315
        %v1466 = vunpack.c.h.b16 %v1315
        %v1467 = vunpack.c.l.b16 %v1316
        %v1468 = vunpack.c.h.b16 %v1316
        %v1469 = vunpack.c.l.b16 %v1317
        %v1470 = vunpack.c.h.b16 %v1317
        %v1471 = vunpack.c.l.b16 %v1318
        %v1472 = vunpack.c.h.b16 %v1318
        %v1473 = vunpack.c.l.b16 %v1319
        %v1474 = vunpack.c.h.b16 %v1319
        %v1475 = vunpack.c.l.b16 %v1320
        %v1476 = vunpack.c.h.b16 %v1320
        %v1477 = vunpack.c.l.b16 %v1321
        %v1478 = vunpack.c.h.b16 %v1321
        %v1479 = vunpack.c.l.b16 %v1322
        %v1480 = vunpack.c.h.b16 %v1322
        %v1481 = vunpack.c.l.b16 %v1323
        %v1482 = vunpack.c.h.b16 %v1323
        %v1483 = vunpack.c.l.b16 %v1324
        %v1484 = vunpack.c.h.b16 %v1324
        %v1485 = vunpack.c.l.b16 %v1325
        %v1486 = vunpack.c.h.b16 %v1325
        %v1487 = vunpack.c.l.b16 %v1326
        %v1488 = vunpack.c.h.b16 %v1326
        %v1489 = vunpack.c.l.b16 %v1327
        %v1490 = vunpack.c.h.b16 %v1327
        %v1491 = vunpack.c.l.b16 %v1328
        %v1492 = vunpack.c.h.b16 %v1328
        %v1493 = vunpack.c.l.b16 %v1329
        %v1494 = vunpack.c.h.b16 %v1329
        %v1495 = vunpack.c.l.b16 %v1330
        %v1496 = vunpack.c.h.b16 %v1330
        %v1497 = vunpack.c.l.b16 %v1331
        %v1498 = vunpack.c.h.b16 %v1331
        %v1499 = vunpack.c.l.b16 %v1332
        %v1500 = vunpack.c.h.b16 %v1332
        %v1501 = vunpack.c.l.b16 %v1333
        %v1502 = vunpack.c.h.b16 %v1333
        %v1503 = vunpack.c.l.b16 %v1334
        %v1504 = vunpack.c.h.b16 %v1334
        %v1505 = vunpack.c.l.b16 %v1335
        %v1506 = vunpack.c.h.b16 %v1335
        %v1507 = vunpack.c.l.b16 %v1336
        %v1508 = vunpack.c.h.b16 %v1336
        %v1509 = vunpack.c.l.b16 %v1337
        %v1510 = vunpack.c.h.b16 %v1337
        %v1511 = vunpack.c.l.b16 %v1338
        %v1512 = vunpack.c.h.b16 %v1338
        %v1513 = vunpack.c.l.b16 %v1339
        %v1514 = vunpack.c.h.b16 %v1339
        %v1515 = vunpack.c.l.b16 %v1340
        %v1516 = vunpack.c.h.b16 %v1340
        %v1517 = vunpack.c.l.b16 %v1341
        %v1518 = vunpack.c.h.b16 %v1341
        %v1519 = vunpack.c.l.b16 %v1342
        %v1520 = vunpack.c.h.b16 %v1342
        %v1521 = vunpack.c.l.b16 %v1343
        %v1522 = vunpack.c.h.b16 %v1343
        %v1523 = vunpack.c.l.b16 %v1344
        %v1524 = vunpack.c.h.b16 %v1344
        %v1525 = vunpack.c.l.b16 %v1345
        %v1526 = vunpack.c.h.b16 %v1345
        %v1527 = vunpack.c.l.b16 %v1346
        %v1528 = vunpack.c.h.b16 %v1346
        %v1529 = vunpack.c.l.b16 %v1347
        %v1530 = vunpack.c.h.b16 %v1347
        %v1531 = vunpack.c.l.b16 %v1348
        %v1532 = vunpack.c.h.b16 %v1348
        %v1533 = vunpack.c.l.b16 %v1349
        %v1534 = vunpack.c.h.b16 %v1349
        %v1535 = vunpack.c.l.b16 %v1350
        %v1536 = vunpack.c.h.b16 %v1350
        %v1537 = vunpack.c.l.b16 %v1351
        %v1538 = vunpack.c.h.b16 %v1351
        %v1539 = vunpack.c.l.b16 %v1352
        %v1540 = vunpack.c.h.b16 %v1352
        %v1541 = vunpack.c.l.b16 %v1353
        %v1542 = vunpack.c.h.b16 %v1353
        %v1543 = vunpack.c.l.b16 %v1354
        %v1544 = vunpack.c.h.b16 %v1354
        %v1545 = vunpack.c.l.b16 %v1355
        %v1546 = vunpack.c.h.b16 %v1355
        %v1547 = vunpack.c.l.b16 %v1356
        %v1548 = vunpack.c.h.b16 %v1356
        %v1549 = vpack.c.b16 %v1423, %v1421
        %v1550 = vpack.c.b16 %v1424, %v1422
        %v1551 = vpack.c.b16 %v1427, %v1425
        %v1552 = vpack.c.b16 %v1428, %v1426
        %v1553 = vpack.c.b16 %v1431, %v1429
        %v1554 = vpack.c.b16 %v1432, %v1430
        %v1555 = vpack.c.b16 %v1435, %v1433
        %v1556 = vpack.c.b16 %v1436, %v1434
        %v1557 = vpack.c.b16 %v1439, %v1437
        %v1558 = vpack.c.b16 %v1440, %v1438
        %v1559 = vpack.c.b16 %v1443, %v1441
        %v1560 = vpack.c.b16 %v1444, %v1442
        %v1561 = vpack.c.b16 %v1447, %v1445
        %v1562 = vpack.c.b16 %v1448, %v1446
        %v1563 = vpack.c.b16 %v1451, %v1449
        %v1564 = vpack.c.b16 %v1452, %v1450
        %v1565 = vpack.c.b16 %v1455, %v1453
        %v1566 = vpack.c.b16 %v1456, %v1454
        %v1567 = vpack.c.b16 %v1459, %v1457
        %v1568 = vpack.c.b16 %v1460, %v1458
        %v1569 = vpack.c.b16 %v1463, %v1461
        %v1570 = vpack.c.b16 %v1464, %v1462
        %v1571 = vpack.c.b16 %v1467, %v1465
        %v1572 = vpack.c.b16 %v1468, %v1466
        %v1573 = vpack.c.b16 %v1471, %v1469
        %v1574 = vpack.c.b16 %v1472, %v1470
        %v1575 = vpack.c.b16 %v1475, %v1473
        %v1576 = vpack.c.b16 %v1476, %v1474
        %v1577 = vpack.c.b16 %v1479, %v1477
        %v1578 = vpack.c.b16 %v1480, %v1478
        %v1579 = vpack.c.b16 %v1483, %v1481
        %v1580 = vpack.c.b16 %v1484, %v1482
        %v1581 = vpack.c.b16 %v1487, %v1485
        %v1582 = vpack.c.b16 %v1488, %v1486
        %v1583 = vpack.c.b16 %v1491, %v1489
        %v1584 = vpack.c.b16 %v1492, %v1490
        %v1585 = vpack.c.b16 %v1495, %v1493
        %v1586 = vpack.c.b16 %v1496, %v1494
        %v1587 = vpack.c.b16 %v1499, %v1497
        %v1588 = vpack.c.b16 %v1500, %v1498
        %v1589 = vpack.c.b16 %v1503, %v1501
        %v1590 = vpack.c.b16 %v1504, %v1502
        %v1591 = vpack.c.b16 %v1507, %v1505
        %v1592 = vpack.c.b16 %v1508, %v1506
        %v1593 = vpack.c.b16 %v1511, %v1509
        %v1594 = vpack.c.b16 %v1512, %v1510
        %v1595 = vpack.c.b16 %v1515, %v1513
        %v1596 = vpack.c.b16 %v1516, %v1514
        %v1597 = vpack.c.b16 %v1519, %v1517
        %v1598 = vpack.c.b16 %v1520, %v1518
        %v1599 = vpack.c.b16 %v1523, %v1521
        %v1600 = vpack.c.b16 %v1524, %v1522
        %v1601 = vpack.c.b16 %v1527, %v1525
        %v1602 = vpack.c.b16 %v1528, %v1526
        %v1603 = vpack.c.b16 %v1531, %v1529
        %v1604 = vpack.c.b16 %v1532, %v1530
        %v1605 = vpack.c.b16 %v1535, %v1533
        %v1606 = vpack.c.b16 %v1536, %v1534
        %v1607 = vpack.c.b16 %v1539, %v1537
        %v1608 = vpack.c.b16 %v1540, %v1538
        %v1609 = vpack.c.b16 %v1543, %v1541
        %v1610 = vpack.c.b16 %v1544, %v1542
        %v1611 = vpack.c.b16 %v1547, %v1545
        %v1612 = vpack.c.b16 %v1548, %v1546
        %1677 = vmatprep.subr.bf16.mxu0 %v1550
        %1678 = vmatpush1.bf16.msra.mxu0 %v1549
        %1679 = vmatprep.subr.bf16.mxu0 %v1552
        %1680 = vmatpush1.bf16.msra.mxu0 %v1551
        %1681 = vmatprep.subr.bf16.mxu0 %v1554
        %1682 = vmatpush1.bf16.msra.mxu0 %v1553
        %1683 = vmatprep.subr.bf16.mxu0 %v1556
        %1684 = vmatpush1.bf16.msra.mxu0 %v1555
        %1685 = vmatprep.subr.bf16.mxu0 %v1558
        %1686 = vmatpush1.bf16.msra.mxu0 %v1557
        %1687 = vmatprep.subr.bf16.mxu0 %v1560
        %1688 = vmatpush1.bf16.msra.mxu0 %v1559
        %1689 = vmatprep.subr.bf16.mxu0 %v1562
        %1690 = vmatpush1.bf16.msra.mxu0 %v1561
        %1691 = vmatprep.subr.bf16.mxu0 %v1564
        %1692 = vmatpush1.bf16.msra.mxu0 %v1563
        %1693 = vmatprep.subr.bf16.mxu0 %v1566
        %1694 = vmatpush1.bf16.msra.mxu0 %v1565
        %1695 = vmatprep.subr.bf16.mxu0 %v1568
        %1696 = vmatpush1.bf16.msra.mxu0 %v1567
        %1697 = vmatprep.subr.bf16.mxu0 %v1570
        %1698 = vmatpush1.bf16.msra.mxu0 %v1569
        %1699 = vmatprep.subr.bf16.mxu0 %v1572
        %1700 = vmatpush1.bf16.msra.mxu0 %v1571
        %1701 = vmatprep.subr.bf16.mxu0 %v1574
        %1702 = vmatpush1.bf16.msra.mxu0 %v1573
        %1703 = vmatprep.subr.bf16.mxu0 %v1576
        %1704 = vmatpush1.bf16.msra.mxu0 %v1575
        %1705 = vmatprep.subr.bf16.mxu0 %v1578
        %1706 = vmatpush1.bf16.msra.mxu0 %v1577
        %1707 = vmatprep.subr.bf16.mxu0 %v1580
        %1708 = vmatpush1.bf16.msra.mxu0 %v1579
        %1709 = vmatprep.mubr.bf16.mxu0 %v1286
        %1710 = vmatmul.mubr.bf16.gmra.mrb[0].mxu0 %v1285
        %v1711 = vpop.f32.mrb[0].mxu0
        %v1712 = vadd.f32 0.0, %v1711
        %v1713 = vpop.f32.mrb[0].mxu0
        %v1714 = vadd.f32 0.0, %v1713
        %v1715 = vpop.f32.mrb[0].mxu0
        %v1716 = vadd.f32 0.0, %v1715
        %v1717 = vpop.f32.mrb[0].mxu0
        %v1718 = vadd.f32 0.0, %v1717
        %1719 = vdwg.mxu0
        %1720 = vmatprep.subr.bf16.mxu0 %v1582
        %1721 = vmatpush1.bf16.msra.mxu0 %v1581
        %1722 = vmatprep.subr.bf16.mxu0 %v1584
        %1723 = vmatpush1.bf16.msra.mxu0 %v1583
        %1724 = vmatprep.subr.bf16.mxu0 %v1586
        %1725 = vmatpush1.bf16.msra.mxu0 %v1585
        %1726 = vmatprep.subr.bf16.mxu0 %v1588
        %1727 = vmatpush1.bf16.msra.mxu0 %v1587
        %1728 = vmatprep.subr.bf16.mxu0 %v1590
        %1729 = vmatpush1.bf16.msra.mxu0 %v1589
        %1730 = vmatprep.subr.bf16.mxu0 %v1592
        %1731 = vmatpush1.bf16.msra.mxu0 %v1591
        %1732 = vmatprep.subr.bf16.mxu0 %v1594
        %1733 = vmatpush1.bf16.msra.mxu0 %v1593
        %1734 = vmatprep.subr.bf16.mxu0 %v1596
        %1735 = vmatpush1.bf16.msra.mxu0 %v1595
        %1736 = vmatprep.subr.bf16.mxu0 %v1598
        %1737 = vmatpush1.bf16.msra.mxu0 %v1597
        %1738 = vmatprep.subr.bf16.mxu0 %v1600
        %1739 = vmatpush1.bf16.msra.mxu0 %v1599
        %1740 = vmatprep.subr.bf16.mxu0 %v1602
        %1741 = vmatpush1.bf16.msra.mxu0 %v1601
        %1742 = vmatprep.subr.bf16.mxu0 %v1604
        %1743 = vmatpush1.bf16.msra.mxu0 %v1603
        %1744 = vmatprep.subr.bf16.mxu0 %v1606
        %1745 = vmatpush1.bf16.msra.mxu0 %v1605
        %1746 = vmatprep.subr.bf16.mxu0 %v1608
        %1747 = vmatpush1.bf16.msra.mxu0 %v1607
        %1748 = vmatprep.subr.bf16.mxu0 %v1610
        %1749 = vmatpush1.bf16.msra.mxu0 %v1609
        %1750 = vmatprep.subr.bf16.mxu0 %v1612
        %1751 = vmatpush1.bf16.msra.mxu0 %v1611
        %1752 = vmatprep.mubr.bf16.mxu0 %v1288
        %1753 = vmatmul.mubr.bf16.gmra.mrb[0].mxu0 %v1287
        %v1754 = vpop.f32.mrb[0].mxu0
        %v1755 = vadd.f32 %v1712, %v1754
        %v1756 = vpop.f32.mrb[0].mxu0
        %v1757 = vadd.f32 %v1714, %v1756
        %v1758 = vpop.f32.mrb[0].mxu0
        %v1759 = vadd.f32 %v1716, %v1758
        %v1760 = vpop.f32.mrb[0].mxu0
        %v1761 = vadd.f32 %v1718, %v1760
        %1762 = vdwg.mxu0
        %v1763 = vadd.f32 %v1289, %v1755
        %v1764 = vadd.f32 %v1290, %v1757
        %v1765 = vadd.f32 %v1291, %v1759
        %v1766 = vadd.f32 %v1292, %v1761
        %1767 = vst [vmem:[#allocation2] sm:$0xff] %v1763
        %1768 = vst [vmem:[#allocation2 + $0x8] sm:$0xff] %v1764
        %1769 = vst [vmem:[#allocation2 + $0x10] sm:$0xff] %v1765
        %1770 = vst [vmem:[#allocation2 + $0x18] sm:$0xff] %v1766
        %p1771 = scmp.eq.s32.totalorder %s24, 1
        // Predicated region
        $region49: #{mlp_forward_bf16.1} parent=31 // pred_check
          %p1772 = pneg %p1771
        $region50: #{mlp_forward_bf16.1} parent=31 // pred_check_branch
          %1774 = sbr.rel (%p1772) target = $region52
        $region51: #{mlp_forward_bf16.1} parent=31 // pred_region
          %v1775 = vld [vmem:[#allocation2] sm:$0xff]
          %v1776 = vld [vmem:[#allocation2 + $0x8] sm:$0xff]
          %v1777 = vld [vmem:[#allocation2 + $0x10] sm:$0xff]
          %v1778 = vld [vmem:[#allocation2 + $0x18] sm:$0xff]
          %v1779 = vpack.c.bf16 %v1777, %v1775
          %v1780 = vpack.c.bf16 %v1778, %v1776
          %v1783 = vunpack.c.l.b16 %v1779
          %v1784 = vunpack.c.l.b16 %v1780
          %v1785 = vunpack.c.h.b16 %v1779
          %v1786 = vunpack.c.h.b16 %v1780
          %v1787 = vpack.c.b16 %v1784, %v1783
          %v1788 = vpack.c.b16 %v1786, %v1785
          %1791 = vst [vmem:[#allocation9] sm:$0xff] %v1787
          %1792 = vst [vmem:[#allocation9 + $0x8] sm:$0xff] %v1788
        $region52: #{mlp_forward_bf16.1} parent=31 // pred_fallthru
          _
        // Predicated region
        $region53: #{mlp_forward_bf16.1} parent=31 // pred_check
          %p1793 = pneg %p127
        $region54: #{mlp_forward_bf16.1} parent=31 // pred_check_branch
          %1795 = sbr.rel (%p1793) target = $region56
        $region55: #{mlp_forward_bf16.1} parent=31 // pred_region
          %s1796 = smul.u32 2, %s23
          %s1798 = ssub.s32 256, 256
          %1799 = vsyncadd [#allocation5], %s1798
          %s1800 = smul.addr %s1796, 2
          %s1801 = smul.addr %s1800, 64
          %s1802 = scalar_lea.hbm %s3, %s1801
          %s1803 = sshll.u32 [#allocation9], 4
          %s1804 = int_to_ptr.vmem [resolvable:$true] %s1803
          %1809 = dma.vmem_to_hbm [thread:$0]  %s1804, 256, %s1802, [#allocation5], 128, 128, 8
        $region56: #{mlp_forward_bf16.1} parent=31 // pred_fallthru
          _
        // Predicated region
        $region57: #{mlp_forward_bf16.1} parent=31 // pred_check
          %p1810 = pneg %p127
        $region58: #{mlp_forward_bf16.1} parent=31 // pred_check_branch
          %1812 = sbr.rel (%p1810) target = $region60
        $region59: #{mlp_forward_bf16.1} parent=31 // pred_region
          %1813 = dma.done [#allocation5], 256
        $region60: #{mlp_forward_bf16.1} parent=31 // pred_fallthru
          _
      $region32: #{mlp_forward_bf16.1} parent=5 // pred_fallthru
        _
      %p1814 = scmp.le.s32.totalorder 2, %s14
      // Predicated region
      $region61: #{mlp_forward_bf16.1} parent=5 // pred_check
        %p1815 = pneg %p1814
      $region62: #{mlp_forward_bf16.1} parent=5 // pred_check_branch
        %1817 = sbr.rel (%p1815) target = $region64
      $region63: #{mlp_forward_bf16.1} parent=5 // pred_region
        %s1818 = ssub.s32 %s14, 2
      $region64: #{mlp_forward_bf16.1} parent=5 // pred_fallthru
        _
    $region6: #{mlp_forward_bf16.1} parent=1 // loop_footer
      %s18 = sadd.s32 1, %s14
    $region7: #{mlp_forward_bf16.1} parent=1 // loop_footer_branch
      %13 = sbr.rel target = $region3
    $region8: #{mlp_forward_bf16.1} parent=1 // loop_exit
      _
    %1819 = vsyncpa [#allocation4], 1
    %s1820 = scalar_lea.sflag [#allocation4], 1
    %1821 = vsyncpa %s1820, 1
    %1822 = vsyncpa [#allocation7], 1
    %s1823 = scalar_lea.sflag [#allocation7], 1
    %1824 = vsyncpa %s1823, 1
    %1825 = vsyncpa [#allocation5], 1
    %s1826 = scalar_lea.sflag [#allocation5], 1
    %1827 = vsyncpa %s1826, 1

</llo_original>
